<compile_context>
chip_gen: v7x
topology: tpu7x:2x2x1
jax: 0.10.0
libtpu: 0.0.40
codegen_flags: <defaults>
</compile_context>

<pallas_src>
import functools
import math

import jax
import jax.numpy as jnp
from jax import lax
from jax.experimental import pallas as pl
from jax.experimental.pallas import tpu as pltpu


# dimension_numbers that contract the LAST dim of both operands:
#   x[(L, d_in)] . W[(d_out, d_in)]  ==  x @ W.T      (projection)
#   q[(Lq, dk)]  . k[(Lk, dk)]       ==  q @ k.T      (attention scores)
_CONTRACT_LAST = (((1,), (1,)), ((), ()))


# ---------------------------------------------------------------------------
# Fused kernel: QKV projection + scaled-dot-product attention, one batch/step
# ---------------------------------------------------------------------------
def _mha_fused_kernel(xq_ref, xk_ref, xv_ref, wq_ref, wk_ref, wv_ref,
                      ctx_ref, attn_ref, *, n_heads, d_k, d_v, scale):
    # xq_ref: (1, Lq, d_model)    xk_ref / xv_ref: (1, Lk, d_model)
    # wq_ref / wk_ref: (H*dk, d_model)   wv_ref: (H*dv, d_model)
    # ctx_ref: (1, Lq, H*dv)      attn_ref: (1, H, Lq, Lk)
    xq = xq_ref[0]
    xk = xk_ref[0]
    xv = xv_ref[0]

    # Fused Q/K/V projections — MXU contracts the untransposed [out,in] weights.
    q = lax.dot_general(xq, wq_ref[...], _CONTRACT_LAST,
                        preferred_element_type=jnp.float32)   # (Lq, H*dk)
    k = lax.dot_general(xk, wk_ref[...], _CONTRACT_LAST,
                        preferred_element_type=jnp.float32)   # (Lk, H*dk)
    v = lax.dot_general(xv, wv_ref[...], _CONTRACT_LAST,
                        preferred_element_type=jnp.float32)   # (Lk, H*dv)

    # Fold 1/sqrt(d_k) into Q (smaller than the scores tensor when Lk > dk).
    q = q * jnp.float32(scale)

    ctx_parts = []
    for h in range(n_heads):  # static unroll; heads live along the lane dim
        qh = q[:, h * d_k:(h + 1) * d_k]          # (Lq, dk)
        kh = k[:, h * d_k:(h + 1) * d_k]          # (Lk, dk)
        vh = v[:, h * d_v:(h + 1) * d_v]          # (Lk, dv)

        # scores = qh @ kh.T  (contract last dims, no explicit transpose)
        s = lax.dot_general(qh, kh, _CONTRACT_LAST,
                            preferred_element_type=jnp.float32)  # (Lq, Lk)

        # numerically-stable softmax; reciprocal on the EUP slot
        m = jnp.max(s, axis=-1, keepdims=True)
        e = jnp.exp(s - m)
        denom = jnp.sum(e, axis=-1, keepdims=True)
        p = e * pl.reciprocal(denom, approx=True)                # (Lq, Lk)

        attn_ref[0, h] = p.astype(attn_ref.dtype)
        ctx_parts.append(
            jnp.dot(p.astype(vh.dtype), vh,
                    preferred_element_type=jnp.float32))         # (Lq, dv)

    # Single lane-dense store of context in its final [Lq, H*dv] layout.
    ctx_ref[0] = jnp.concatenate(ctx_parts, axis=-1).astype(ctx_ref.dtype)


def mha_forward(input_Q, input_K, input_V, W_Q, W_K, W_V, *, n_heads, d_k, d_v):
    """input_*: [B, L, d_model]; W_*: [out_features, d_model] (torch layout)."""
    B, Lq, d_model = input_Q.shape
    Lk = input_K.shape[1]

    kernel = functools.partial(
        _mha_fused_kernel, n_heads=n_heads, d_k=d_k, d_v=d_v,
        scale=1.0 / math.sqrt(d_k))

    ctx, attn = pl.pallas_call(
        kernel,
        out_shape=(
            jax.ShapeDtypeStruct((B, Lq, n_heads * d_v), input_Q.dtype),
            jax.ShapeDtypeStruct((B, n_heads, Lq, Lk), jnp.float32),
        ),
        grid_spec=pltpu.PrefetchScalarGridSpec(
            num_scalar_prefetch=0,
            grid=(B,),
            in_specs=[
                pl.BlockSpec((1, Lq, d_model), lambda b: (b, 0, 0)),
                pl.BlockSpec((1, Lk, d_model), lambda b: (b, 0, 0)),
                pl.BlockSpec((1, Lk, d_model), lambda b: (b, 0, 0)),
                # weights: constant block index -> stays resident in VMEM
                pl.BlockSpec((n_heads * d_k, d_model), lambda b: (0, 0)),
                pl.BlockSpec((n_heads * d_k, d_model), lambda b: (0, 0)),
                pl.BlockSpec((n_heads * d_v, d_model), lambda b: (0, 0)),
            ],
            out_specs=[
                pl.BlockSpec((1, Lq, n_heads * d_v), lambda b: (b, 0, 0)),
                pl.BlockSpec((1, n_heads, Lq, Lk), lambda b: (b, 0, 0, 0)),
            ],
        ),
        compiler_params=pltpu.CompilerParams(
            dimension_semantics=("parallel",)),
    )(input_Q, input_K, input_V, W_Q, W_K, W_V)
    return ctx, attn


# ---------------------------------------------------------------------------
# MultiHeadAttention module (parameters + forward glue)
# ---------------------------------------------------------------------------
class MultiHeadAttention:
    def __init__(self, d_model, d_k, d_v, n_heads, key):
        self.d_model, self.d_k, self.d_v, self.n_heads = d_model, d_k, d_v, n_heads
        k1, k2, k3, k4 = jax.random.split(key, 4)

        def init_linear(k, out_f, in_f):
            bound = 1.0 / math.sqrt(in_f)  # torch nn.Linear default init range
            return jax.random.uniform(
                k, (out_f, in_f), jnp.float32, minval=-bound, maxval=bound)

        self.W_Q = init_linear(k1, d_k * n_heads, d_model)
        self.W_K = init_linear(k2, d_k * n_heads, d_model)
        self.W_V = init_linear(k3, d_v * n_heads, d_model)
        # `fc` (and `residual`) are never applied in the reference forward;
        # kept only for parameter/shape fidelity.
        # TODO(synk): reference forward never uses self.fc / residual.
        self.fc = init_linear(k4, d_model, n_heads * d_v)

    def __call__(self, input_Q, input_K, input_V):
        return mha_forward(
            input_Q, input_K, input_V, self.W_Q, self.W_K, self.W_V,
            n_heads=self.n_heads, d_k=self.d_k, d_v=self.d_v)


# ---------------------------------------------------------------------------
# Reference (pure JAX) for sanity check
# ---------------------------------------------------------------------------
def reference_mha(mha, input_Q, input_K, input_V):
    B, Lq, _ = input_Q.shape
    H, dk, dv = mha.n_heads, mha.d_k, mha.d_v
    Q = (input_Q @ mha.W_Q.T).reshape(B, Lq, H, dk).transpose(0, 2, 1, 3)
    K = (input_K @ mha.W_K.T).reshape(B, -1, H, dk).transpose(0, 2, 1, 3)
    V = (input_V @ mha.W_V.T).reshape(B, -1, H, dv).transpose(0, 2, 1, 3)
    scores = jnp.einsum("bhqd,bhkd->bhqk", Q, K) / math.sqrt(dk)
    attn = jax.nn.softmax(scores, axis=-1)
    ctx = jnp.einsum("bhqk,bhkd->bhqd", attn, V)
    ctx = ctx.transpose(0, 2, 1, 3).reshape(B, Lq, H * dv)
    return ctx, attn


if __name__ == "__main__":
    key = jax.random.PRNGKey(0)
    k_param, k_q, k_k, k_v = jax.random.split(key, 4)

    B, L, d_model, n_heads, d_k, d_v = 2, 8, 32, 4, 8, 8

    mha = MultiHeadAttention(d_model, d_k, d_v, n_heads, k_param)

    input_Q = jax.random.normal(k_q, (B, L, d_model), jnp.float32)
    input_K = jax.random.normal(k_k, (B, L, d_model), jnp.float32)
    input_V = jax.random.normal(k_v, (B, L, d_model), jnp.float32)

    context, attn = mha(input_Q, input_K, input_V)
    context = jax.block_until_ready(context)
    attn = jax.block_until_ready(attn)

    ctx_ref, attn_ref = reference_mha(mha, input_Q, input_K, input_V)
    assert context.shape == (B, L, n_heads * d_v)
    assert attn.shape == (B, n_heads, L, L)
    # tolerance accounts for the EUP approx-reciprocal in the softmax denom
    assert jnp.allclose(context, ctx_ref, atol=1e-2, rtol=1e-2)
    assert jnp.allclose(attn, attn_ref, atol=1e-2, rtol=1e-2)

    print("KERNEL_OK")
</pallas_src>

<mosaic_0001>
module attributes {stable_mosaic.version = 11 : i64} {
  func.func @_mha_fused_kernel(%arg0: i32, %arg1: memref<1x8x32xf32, #tpu.memory_space<vmem>>, %arg2: memref<1x8x32xf32, #tpu.memory_space<vmem>>, %arg3: memref<1x8x32xf32, #tpu.memory_space<vmem>>, %arg4: memref<32x32xf32, #tpu.memory_space<vmem>>, %arg5: memref<32x32xf32, #tpu.memory_space<vmem>>, %arg6: memref<32x32xf32, #tpu.memory_space<vmem>>, %arg7: memref<1x8x32xf32, #tpu.memory_space<vmem>>, %arg8: memref<1x4x8x8xf32, #tpu.memory_space<vmem>>) attributes {dimension_semantics = [#tpu.dimension_semantics<parallel>], iteration_bounds = array<i64: 2>, scalar_prefetch = 0 : i64, scratch_operands = 0 : i64, tpu.core_type = #tpu.core_type<tc>, window_params = [{transform_indices = @transform_0, window_bounds = array<i64: 1, 8, 32>}, {transform_indices = @transform_1, window_bounds = array<i64: 1, 8, 32>}, {transform_indices = @transform_2, window_bounds = array<i64: 1, 8, 32>}, {pipeline_mode = #tpu.pipeline_mode<synchronous>, transform_indices = @transform_3, window_bounds = array<i64: 32, 32>}, {pipeline_mode = #tpu.pipeline_mode<synchronous>, transform_indices = @transform_4, window_bounds = array<i64: 32, 32>}, {pipeline_mode = #tpu.pipeline_mode<synchronous>, transform_indices = @transform_5, window_bounds = array<i64: 32, 32>}, {transform_indices = @transform_6, window_bounds = array<i64: 1, 8, 32>}, {transform_indices = @transform_7, window_bounds = array<i64: 1, 4, 8, 8>}]} {
    %c0 = arith.constant 0 : index
    %c0_0 = arith.constant 0 : index
    %c0_1 = arith.constant 0 : index
    %0 = vector.load %arg1[%c0, %c0_0, %c0_1] : memref<1x8x32xf32, #tpu.memory_space<vmem>>, vector<1x8x32xf32>
    %1 = vector.shape_cast %0 : vector<1x8x32xf32> to vector<8x32xf32>
    %c0_2 = arith.constant 0 : index
    %c0_3 = arith.constant 0 : index
    %c0_4 = arith.constant 0 : index
    %2 = vector.load %arg2[%c0_2, %c0_3, %c0_4] : memref<1x8x32xf32, #tpu.memory_space<vmem>>, vector<1x8x32xf32>
    %3 = vector.shape_cast %2 : vector<1x8x32xf32> to vector<8x32xf32>
    %c0_5 = arith.constant 0 : index
    %c0_6 = arith.constant 0 : index
    %c0_7 = arith.constant 0 : index
    %4 = vector.load %arg3[%c0_5, %c0_6, %c0_7] : memref<1x8x32xf32, #tpu.memory_space<vmem>>, vector<1x8x32xf32>
    %5 = vector.shape_cast %4 : vector<1x8x32xf32> to vector<8x32xf32>
    %c0_8 = arith.constant 0 : index
    %c0_9 = arith.constant 0 : index
    %6 = vector.load %arg4[%c0_8, %c0_9] : memref<32x32xf32, #tpu.memory_space<vmem>>, vector<32x32xf32>
    %cst = arith.constant dense<0.000000e+00> : vector<8x32xf32>
    %7 = tpu.matmul %1, %6, %cst {dimension_numbers = #tpu.dot_dimension_numbers<[1], [1], [0], [0], [0, 0, 1, 0], [], []>} : vector<8x32xf32>, vector<32x32xf32>, vector<8x32xf32> -> vector<8x32xf32>
    %c0_10 = arith.constant 0 : index
    %c0_11 = arith.constant 0 : index
    %8 = vector.load %arg5[%c0_10, %c0_11] : memref<32x32xf32, #tpu.memory_space<vmem>>, vector<32x32xf32>
    %cst_12 = arith.constant dense<0.000000e+00> : vector<8x32xf32>
    %9 = tpu.matmul %3, %8, %cst_12 {dimension_numbers = #tpu.dot_dimension_numbers<[1], [1], [0], [0], [0, 0, 1, 0], [], []>} : vector<8x32xf32>, vector<32x32xf32>, vector<8x32xf32> -> vector<8x32xf32>
    %c0_13 = arith.constant 0 : index
    %c0_14 = arith.constant 0 : index
    %10 = vector.load %arg6[%c0_13, %c0_14] : memref<32x32xf32, #tpu.memory_space<vmem>>, vector<32x32xf32>
    %cst_15 = arith.constant dense<0.000000e+00> : vector<8x32xf32>
    %11 = tpu.matmul %5, %10, %cst_15 {dimension_numbers = #tpu.dot_dimension_numbers<[1], [1], [0], [0], [0, 0, 1, 0], [], []>} : vector<8x32xf32>, vector<32x32xf32>, vector<8x32xf32> -> vector<8x32xf32>
    %cst_16 = arith.constant 0.353553385 : f32
    %12 = vector.broadcast %cst_16 : f32 to vector<8x32xf32>
    %13 = arith.mulf %7, %12 : vector<8x32xf32>
    %14 = vector.extract_strided_slice %13 {offsets = [0, 0], sizes = [8, 8], strides = [1, 1]} : vector<8x32xf32> to vector<8x8xf32>
    %15 = vector.extract_strided_slice %9 {offsets = [0, 0], sizes = [8, 8], strides = [1, 1]} : vector<8x32xf32> to vector<8x8xf32>
    %16 = vector.extract_strided_slice %11 {offsets = [0, 0], sizes = [8, 8], strides = [1, 1]} : vector<8x32xf32> to vector<8x8xf32>
    %cst_17 = arith.constant dense<0.000000e+00> : vector<8x8xf32>
    %17 = tpu.matmul %14, %15, %cst_17 {dimension_numbers = #tpu.dot_dimension_numbers<[1], [1], [0], [0], [0, 0, 1, 0], [], []>} : vector<8x8xf32>, vector<8x8xf32>, vector<8x8xf32> -> vector<8x8xf32>
    %cst_18 = arith.constant dense<0xFF800000> : vector<8xf32>
    %18 = vector.multi_reduction <maximumf>, %17, %cst_18 [1] : vector<8x8xf32> to vector<8xf32>
    %19 = vector.shape_cast %18 : vector<8xf32> to vector<8x1xf32>
    %20 = vector.broadcast %19 : vector<8x1xf32> to vector<8x8xf32>
    %21 = arith.subf %17, %20 : vector<8x8xf32>
    %22 = math.exp %21 : vector<8x8xf32>
    %cst_19 = arith.constant dense<0.000000e+00> : vector<8xf32>
    %23 = vector.multi_reduction <add>, %22, %cst_19 [1] : vector<8x8xf32> to vector<8xf32>
    %24 = vector.shape_cast %23 : vector<8xf32> to vector<8x1xf32>
    %25 = tpu.reciprocal %24 {approx = true} : vector<8x1xf32> -> vector<8x1xf32>
    %26 = vector.broadcast %25 : vector<8x1xf32> to vector<8x8xf32>
    %27 = arith.mulf %22, %26 : vector<8x8xf32>
    %c0_20 = arith.constant 0 : index
    %c0_21 = arith.constant 0 : index
    %c0_22 = arith.constant 0 : index
    %c0_23 = arith.constant 0 : index
    %28 = vector.load %arg8[%c0_20, %c0_21, %c0_22, %c0_23] : memref<1x4x8x8xf32, #tpu.memory_space<vmem>>, vector<1x1x8x8xf32>
    %29 = vector.shape_cast %28 : vector<1x1x8x8xf32> to vector<8x8xf32>
    %30 = vector.shape_cast %27 : vector<8x8xf32> to vector<1x1x8x8xf32>
    tpu.vector_store %arg8[%c0_20, %c0_21, %c0_22, %c0_23], %30 {strides = array<i32>} : memref<1x4x8x8xf32, #tpu.memory_space<vmem>>, vector<1x1x8x8xf32>,
    %cst_24 = arith.constant dense<0.000000e+00> : vector<8x8xf32>
    %31 = tpu.matmul %27, %16, %cst_24 {dimension_numbers = #tpu.dot_dimension_numbers<[1], [0], [0], [1], [0, 0, 1, 1], [], []>} : vector<8x8xf32>, vector<8x8xf32>, vector<8x8xf32> -> vector<8x8xf32>
    %32 = vector.extract_strided_slice %13 {offsets = [0, 8], sizes = [8, 8], strides = [1, 1]} : vector<8x32xf32> to vector<8x8xf32>
    %33 = vector.extract_strided_slice %9 {offsets = [0, 8], sizes = [8, 8], strides = [1, 1]} : vector<8x32xf32> to vector<8x8xf32>
    %34 = vector.extract_strided_slice %11 {offsets = [0, 8], sizes = [8, 8], strides = [1, 1]} : vector<8x32xf32> to vector<8x8xf32>
    %cst_25 = arith.constant dense<0.000000e+00> : vector<8x8xf32>
    %35 = tpu.matmul %32, %33, %cst_25 {dimension_numbers = #tpu.dot_dimension_numbers<[1], [1], [0], [0], [0, 0, 1, 0], [], []>} : vector<8x8xf32>, vector<8x8xf32>, vector<8x8xf32> -> vector<8x8xf32>
    %cst_26 = arith.constant dense<0xFF800000> : vector<8xf32>
    %36 = vector.multi_reduction <maximumf>, %35, %cst_26 [1] : vector<8x8xf32> to vector<8xf32>
    %37 = vector.shape_cast %36 : vector<8xf32> to vector<8x1xf32>
    %38 = vector.broadcast %37 : vector<8x1xf32> to vector<8x8xf32>
    %39 = arith.subf %35, %38 : vector<8x8xf32>
    %40 = math.exp %39 : vector<8x8xf32>
    %cst_27 = arith.constant dense<0.000000e+00> : vector<8xf32>
    %41 = vector.multi_reduction <add>, %40, %cst_27 [1] : vector<8x8xf32> to vector<8xf32>
    %42 = vector.shape_cast %41 : vector<8xf32> to vector<8x1xf32>
    %43 = tpu.reciprocal %42 {approx = true} : vector<8x1xf32> -> vector<8x1xf32>
    %44 = vector.broadcast %43 : vector<8x1xf32> to vector<8x8xf32>
    %45 = arith.mulf %40, %44 : vector<8x8xf32>
    %c0_28 = arith.constant 0 : index
    %c1 = arith.constant 1 : index
    %c0_29 = arith.constant 0 : index
    %c0_30 = arith.constant 0 : index
    %46 = vector.load %arg8[%c0_28, %c1, %c0_29, %c0_30] : memref<1x4x8x8xf32, #tpu.memory_space<vmem>>, vector<1x1x8x8xf32>
    %47 = vector.shape_cast %46 : vector<1x1x8x8xf32> to vector<8x8xf32>
    %48 = vector.shape_cast %45 : vector<8x8xf32> to vector<1x1x8x8xf32>
    tpu.vector_store %arg8[%c0_28, %c1, %c0_29, %c0_30], %48 {strides = array<i32>} : memref<1x4x8x8xf32, #tpu.memory_space<vmem>>, vector<1x1x8x8xf32>,
    %cst_31 = arith.constant dense<0.000000e+00> : vector<8x8xf32>
    %49 = tpu.matmul %45, %34, %cst_31 {dimension_numbers = #tpu.dot_dimension_numbers<[1], [0], [0], [1], [0, 0, 1, 1], [], []>} : vector<8x8xf32>, vector<8x8xf32>, vector<8x8xf32> -> vector<8x8xf32>
    %50 = vector.extract_strided_slice %13 {offsets = [0, 16], sizes = [8, 8], strides = [1, 1]} : vector<8x32xf32> to vector<8x8xf32>
    %51 = vector.extract_strided_slice %9 {offsets = [0, 16], sizes = [8, 8], strides = [1, 1]} : vector<8x32xf32> to vector<8x8xf32>
    %52 = vector.extract_strided_slice %11 {offsets = [0, 16], sizes = [8, 8], strides = [1, 1]} : vector<8x32xf32> to vector<8x8xf32>
    %cst_32 = arith.constant dense<0.000000e+00> : vector<8x8xf32>
    %53 = tpu.matmul %50, %51, %cst_32 {dimension_numbers = #tpu.dot_dimension_numbers<[1], [1], [0], [0], [0, 0, 1, 0], [], []>} : vector<8x8xf32>, vector<8x8xf32>, vector<8x8xf32> -> vector<8x8xf32>
    %cst_33 = arith.constant dense<0xFF800000> : vector<8xf32>
    %54 = vector.multi_reduction <maximumf>, %53, %cst_33 [1] : vector<8x8xf32> to vector<8xf32>
    %55 = vector.shape_cast %54 : vector<8xf32> to vector<8x1xf32>
    %56 = vector.broadcast %55 : vector<8x1xf32> to vector<8x8xf32>
    %57 = arith.subf %53, %56 : vector<8x8xf32>
    %58 = math.exp %57 : vector<8x8xf32>
    %cst_34 = arith.constant dense<0.000000e+00> : vector<8xf32>
    %59 = vector.multi_reduction <add>, %58, %cst_34 [1] : vector<8x8xf32> to vector<8xf32>
    %60 = vector.shape_cast %59 : vector<8xf32> to vector<8x1xf32>
    %61 = tpu.reciprocal %60 {approx = true} : vector<8x1xf32> -> vector<8x1xf32>
    %62 = vector.broadcast %61 : vector<8x1xf32> to vector<8x8xf32>
    %63 = arith.mulf %58, %62 : vector<8x8xf32>
    %c0_35 = arith.constant 0 : index
    %c2 = arith.constant 2 : index
    %c0_36 = arith.constant 0 : index
    %c0_37 = arith.constant 0 : index
    %64 = vector.load %arg8[%c0_35, %c2, %c0_36, %c0_37] : memref<1x4x8x8xf32, #tpu.memory_space<vmem>>, vector<1x1x8x8xf32>
    %65 = vector.shape_cast %64 : vector<1x1x8x8xf32> to vector<8x8xf32>
    %66 = vector.shape_cast %63 : vector<8x8xf32> to vector<1x1x8x8xf32>
    tpu.vector_store %arg8[%c0_35, %c2, %c0_36, %c0_37], %66 {strides = array<i32>} : memref<1x4x8x8xf32, #tpu.memory_space<vmem>>, vector<1x1x8x8xf32>,
    %cst_38 = arith.constant dense<0.000000e+00> : vector<8x8xf32>
    %67 = tpu.matmul %63, %52, %cst_38 {dimension_numbers = #tpu.dot_dimension_numbers<[1], [0], [0], [1], [0, 0, 1, 1], [], []>} : vector<8x8xf32>, vector<8x8xf32>, vector<8x8xf32> -> vector<8x8xf32>
    %68 = vector.extract_strided_slice %13 {offsets = [0, 24], sizes = [8, 8], strides = [1, 1]} : vector<8x32xf32> to vector<8x8xf32>
    %69 = vector.extract_strided_slice %9 {offsets = [0, 24], sizes = [8, 8], strides = [1, 1]} : vector<8x32xf32> to vector<8x8xf32>
    %70 = vector.extract_strided_slice %11 {offsets = [0, 24], sizes = [8, 8], strides = [1, 1]} : vector<8x32xf32> to vector<8x8xf32>
    %cst_39 = arith.constant dense<0.000000e+00> : vector<8x8xf32>
    %71 = tpu.matmul %68, %69, %cst_39 {dimension_numbers = #tpu.dot_dimension_numbers<[1], [1], [0], [0], [0, 0, 1, 0], [], []>} : vector<8x8xf32>, vector<8x8xf32>, vector<8x8xf32> -> vector<8x8xf32>
    %cst_40 = arith.constant dense<0xFF800000> : vector<8xf32>
    %72 = vector.multi_reduction <maximumf>, %71, %cst_40 [1] : vector<8x8xf32> to vector<8xf32>
    %73 = vector.shape_cast %72 : vector<8xf32> to vector<8x1xf32>
    %74 = vector.broadcast %73 : vector<8x1xf32> to vector<8x8xf32>
    %75 = arith.subf %71, %74 : vector<8x8xf32>
    %76 = math.exp %75 : vector<8x8xf32>
    %cst_41 = arith.constant dense<0.000000e+00> : vector<8xf32>
    %77 = vector.multi_reduction <add>, %76, %cst_41 [1] : vector<8x8xf32> to vector<8xf32>
    %78 = vector.shape_cast %77 : vector<8xf32> to vector<8x1xf32>
    %79 = tpu.reciprocal %78 {approx = true} : vector<8x1xf32> -> vector<8x1xf32>
    %80 = vector.broadcast %79 : vector<8x1xf32> to vector<8x8xf32>
    %81 = arith.mulf %76, %80 : vector<8x8xf32>
    %c0_42 = arith.constant 0 : index
    %c3 = arith.constant 3 : index
    %c0_43 = arith.constant 0 : index
    %c0_44 = arith.constant 0 : index
    %82 = vector.load %arg8[%c0_42, %c3, %c0_43, %c0_44] : memref<1x4x8x8xf32, #tpu.memory_space<vmem>>, vector<1x1x8x8xf32>
    %83 = vector.shape_cast %82 : vector<1x1x8x8xf32> to vector<8x8xf32>
    %84 = vector.shape_cast %81 : vector<8x8xf32> to vector<1x1x8x8xf32>
    tpu.vector_store %arg8[%c0_42, %c3, %c0_43, %c0_44], %84 {strides = array<i32>} : memref<1x4x8x8xf32, #tpu.memory_space<vmem>>, vector<1x1x8x8xf32>,
    %cst_45 = arith.constant dense<0.000000e+00> : vector<8x8xf32>
    %85 = tpu.matmul %81, %70, %cst_45 {dimension_numbers = #tpu.dot_dimension_numbers<[1], [0], [0], [1], [0, 0, 1, 1], [], []>} : vector<8x8xf32>, vector<8x8xf32>, vector<8x8xf32> -> vector<8x8xf32>
    %86 = tpu.concatenate %31, %49, %67, %85 in 1 : vector<8x8xf32>, vector<8x8xf32>, vector<8x8xf32>, vector<8x8xf32> -> vector<8x32xf32>
    %c0_46 = arith.constant 0 : index
    %c0_47 = arith.constant 0 : index
    %c0_48 = arith.constant 0 : index
    %87 = vector.load %arg7[%c0_46, %c0_47, %c0_48] : memref<1x8x32xf32, #tpu.memory_space<vmem>>, vector<1x8x32xf32>
    %88 = vector.shape_cast %87 : vector<1x8x32xf32> to vector<8x32xf32>
    %89 = vector.shape_cast %86 : vector<8x32xf32> to vector<1x8x32xf32>
    tpu.vector_store %arg7[%c0_46, %c0_47, %c0_48], %89 {strides = array<i32>} : memref<1x8x32xf32, #tpu.memory_space<vmem>>, vector<1x8x32xf32>,
    return
  }
  func.func @transform_0(%arg0: i32) -> (i32, i32, i32) {
    %c0_i32 = arith.constant 0 : i32
    %c0_i32_0 = arith.constant 0 : i32
    %c0_i32_1 = arith.constant 0 : i32
    return %arg0, %c0_i32, %c0_i32_0 : i32, i32, i32
  }
  func.func @transform_1(%arg0: i32) -> (i32, i32, i32) {
    %c0_i32 = arith.constant 0 : i32
    %c0_i32_0 = arith.constant 0 : i32
    %c0_i32_1 = arith.constant 0 : i32
    return %arg0, %c0_i32, %c0_i32_0 : i32, i32, i32
  }
  func.func @transform_2(%arg0: i32) -> (i32, i32, i32) {
    %c0_i32 = arith.constant 0 : i32
    %c0_i32_0 = arith.constant 0 : i32
    %c0_i32_1 = arith.constant 0 : i32
    return %arg0, %c0_i32, %c0_i32_0 : i32, i32, i32
  }
  func.func @transform_3(%arg0: i32) -> (i32, i32) {
    %c0_i32 = arith.constant 0 : i32
    %c0_i32_0 = arith.constant 0 : i32
    %c0_i32_1 = arith.constant 0 : i32
    return %c0_i32, %c0_i32_0 : i32, i32
  }
  func.func @transform_4(%arg0: i32) -> (i32, i32) {
    %c0_i32 = arith.constant 0 : i32
    %c0_i32_0 = arith.constant 0 : i32
    %c0_i32_1 = arith.constant 0 : i32
    return %c0_i32, %c0_i32_0 : i32, i32
  }
  func.func @transform_5(%arg0: i32) -> (i32, i32) {
    %c0_i32 = arith.constant 0 : i32
    %c0_i32_0 = arith.constant 0 : i32
    %c0_i32_1 = arith.constant 0 : i32
    return %c0_i32, %c0_i32_0 : i32, i32
  }
  func.func @transform_6(%arg0: i32) -> (i32, i32, i32) {
    %c0_i32 = arith.constant 0 : i32
    %c0_i32_0 = arith.constant 0 : i32
    %c0_i32_1 = arith.constant 0 : i32
    return %arg0, %c0_i32, %c0_i32_0 : i32, i32, i32
  }
  func.func @transform_7(%arg0: i32) -> (i32, i32, i32, i32) {
    %c0_i32 = arith.constant 0 : i32
    %c0_i32_0 = arith.constant 0 : i32
    %c0_i32_1 = arith.constant 0 : i32
    %c0_i32_2 = arith.constant 0 : i32
    return %arg0, %c0_i32, %c0_i32_0, %c0_i32_1 : i32, i32, i32, i32
  }
}

</mosaic_0001>

<llo_original>
// kernel: tpu_custom_call.1
$region0: #{tpu_custom_call.1}
  #allocation0 [shape = 'u32[]', space=smem, size = 0x4, offset = 0x4, fixed_abs, tag = 'smem constant byte address 0x4 - core index']
  #allocation1 [shape = 'u32[144,128]{1,0:T(1,128)}', space=vmem, size = 0x12000, scoped, tag = 'internal scratch']
  %s0 = inlined_call_operand.hbm [shape: f32[2,8,32], index: 0, kind: input, shape index: {}]
  %s1 = inlined_call_operand.hbm [shape: f32[2,8,32], index: 1, kind: input, shape index: {}]
  %s2 = inlined_call_operand.hbm [shape: f32[2,8,32], index: 2, kind: input, shape index: {}]
  %s3 = inlined_call_operand.hbm [shape: f32[32,32], index: 3, kind: input, shape index: {}]
  %s4 = inlined_call_operand.hbm [shape: f32[32,32], index: 4, kind: input, shape index: {}]
  %s5 = inlined_call_operand.hbm [shape: f32[32,32], index: 5, kind: input, shape index: {}]
  %s6 = inlined_call_operand.hbm [shape: f32[2,8,32], index: 6, kind: output, shape index: {0}]
  %s7 = inlined_call_operand.hbm [shape: f32[2,4,8,8], index: 7, kind: output, shape index: {1}]
  %8 = xla_tuple %s6, %s7
  %s9 = sld [smem:[#allocation0]]
  $region89: #{tpu_custom_call.1} parent=0
    _
  %s11 = ssub.s32 1, %s9
  %s12 = scalar_select 0, %s11, %s9
  $region1: #{tpu_custom_call.1} parent=0
    #allocation2 [shape = 'u8[8192]{0}', space=vmem, size = 0x2000, scoped, tag = 'input window, operand 0']
    #allocation3 [shape = 's32[2]{0}', space=sflag, size = 0x8, scoped, tag = 'scoped memory for tpu_custom_call.1']
    #allocation4 [shape = 's32[2]{0}', space=sflag, size = 0x8, scoped, tag = 'scoped memory for tpu_custom_call.1']
    #allocation5 [shape = 'u8[8192]{0}', space=vmem, size = 0x2000, scoped, tag = 'input window, operand 1']
    #allocation6 [shape = 's32[2]{0}', space=sflag, size = 0x8, scoped, tag = 'scoped memory for tpu_custom_call.1']
    #allocation7 [shape = 'u8[8192]{0}', space=vmem, size = 0x2000, scoped, tag = 'input window, operand 2']
    #allocation8 [shape = 'u8[16384]{0}', space=vmem, size = 0x4000, scoped, tag = 'input window, operand 3, single buffered']
    #allocation9 [shape = 's32[1]{0}', space=sflag, size = 0x4, scoped, tag = 'scoped memory for tpu_custom_call.1']
    #allocation10 [shape = 'u8[16384]{0}', space=vmem, size = 0x4000, scoped, tag = 'input window, operand 4, single buffered']
    #allocation11 [shape = 'u8[16384]{0}', space=vmem, size = 0x4000, scoped, tag = 'input window, operand 5, single buffered']
    #allocation12 [shape = 's32[1]{0}', space=sflag, size = 0x4, scoped, tag = 'scoped memory for tpu_custom_call.1']
    #allocation13 [shape = 'u8[8192]{0}', space=vmem, size = 0x2000, scoped, tag = 'output window, operand 0']
    #allocation14 [shape = 'u8[32768]{0}', space=vmem, size = 0x8000, scoped, tag = 'output window, operand 1']
    #allocation15 [shape = 's32[2]{0}', space=sflag, size = 0x8, scoped, tag = 'scoped memory for tpu_custom_call.1']
    %13 = vsyncpa [#allocation3], 0
    %s14 = scalar_lea.sflag [#allocation3], 1
    %15 = vsyncpa %s14, 0
    %16 = vsyncpa [#allocation6], 0
    %s17 = scalar_lea.sflag [#allocation6], 1
    %18 = vsyncpa %s17, 0
    %19 = vsyncpa [#allocation9], 0
    %20 = vsyncpa [#allocation12], 0
    %21 = vsyncpa [#allocation4], 0
    %s22 = scalar_lea.sflag [#allocation4], 1
    %23 = vsyncpa %s22, 0
    %24 = vsyncpa [#allocation15], 0
    %s25 = scalar_lea.sflag [#allocation15], 1
    %26 = vsyncpa %s25, 0
    loop: start=0, step=1, limit=4
    $region2: #{tpu_custom_call.1} parent=1 // loop_pre_header
      _
    $region3: #{tpu_custom_call.1} parent=1 // loop_header
      %s28 = sphi 0, %s32
      %p29 = scmp.ge.s32.totalorder %s28, 4
      %s38 = sphi 0, %s40
      %s41 = sphi 0, %s38
      %s42 = sphi 0, %s41
      %s58 = sphi 0, %s42
      %s64 = sphi 0, %s66
      %s67 = sphi 0, %s64
      %s68 = sphi 0, %s67
      %s84 = sphi 0, %s68
      %s90 = sphi 0, %s92
      %s93 = sphi 0, %s90
      %s94 = sphi 0, %s93
      %s110 = sphi 0, %s94
      %s114 = sphi 0, %s114
      %s116 = sphi 0, %s114
      %s117 = sphi 0, %s116
      %s131 = sphi 0, %s117
      %s135 = sphi 0, %s135
      %s137 = sphi 0, %s135
      %s138 = sphi 0, %s137
      %s152 = sphi 0, %s138
      %s156 = sphi 0, %s156
      %s158 = sphi 0, %s156
      %s159 = sphi 0, %s158
      %s173 = sphi 0, %s159
      %s179 = sphi 0, %s181
      %s182 = sphi 0, %s179
      %s183 = sphi 0, %s182
      %s199 = sphi 0, %s183
      %s205 = sphi 0, %s207
      %s208 = sphi 0, %s205
      %s209 = sphi 0, %s208
      %s225 = sphi 0, %s209
    $region4: #{tpu_custom_call.1} parent=1 // loop_header_branch
      %31 = sbr.rel (%p29) target = $region8
    $region5: #{tpu_custom_call.1} parent=1 // loop_body
      %s33 = ssub.s32 %s28, 1
      %s34 = ssub.s32 %s28, 2
      %s35 = sadd.s32 %s28, 1
      %s36 = ssub.s32 %s28, %s35
      %p37 = scmp.eq.s32.totalorder %s36, 0
      %s39 = sadd.s32 %s38, 1
      %s40 = scalar_select %p37, %s38, %s39
      %p43 = pneg %p37
      %p44 = scmp.eq.s32.totalorder %s28, 1
      %p45 = por %p43, %p44
      %p46 = scmp.ne.s32.totalorder %s38, %s41
      %p47 = scmp.eq.s32.totalorder %s28, 0
      %p48 = por %p46, %p47
      %p49 = scmp.ne.s32.totalorder %s38, %s41
      %p50 = scmp.eq.s32.totalorder %s33, 1
      %p51 = por %p49, %p50
      %p52 = scmp.ne.s32.totalorder %s41, %s42
      %p53 = scmp.eq.s32.totalorder %s33, 0
      %p54 = por %p52, %p53
      %p55 = scmp.ne.s32.totalorder %s41, %s42
      %p56 = scmp.eq.s32.totalorder %s34, 1
      %p57 = por %p55, %p56
      %p59 = scmp.ne.s32.totalorder %s42, %s58
      %p60 = scmp.eq.s32.totalorder %s34, 0
      %p61 = por %p59, %p60
      %s62 = ssub.s32 %s28, %s35
      %p63 = scmp.eq.s32.totalorder %s62, 0
      %s65 = sadd.s32 %s64, 1
      %s66 = scalar_select %p63, %s64, %s65
      %p69 = pneg %p63
      %p70 = scmp.eq.s32.totalorder %s28, 1
      %p71 = por %p69, %p70
      %p72 = scmp.ne.s32.totalorder %s64, %s67
      %p73 = scmp.eq.s32.totalorder %s28, 0
      %p74 = por %p72, %p73
      %p75 = scmp.ne.s32.totalorder %s64, %s67
      %p76 = scmp.eq.s32.totalorder %s33, 1
      %p77 = por %p75, %p76
      %p78 = scmp.ne.s32.totalorder %s67, %s68
      %p79 = scmp.eq.s32.totalorder %s33, 0
      %p80 = por %p78, %p79
      %p81 = scmp.ne.s32.totalorder %s67, %s68
      %p82 = scmp.eq.s32.totalorder %s34, 1
      %p83 = por %p81, %p82
      %p85 = scmp.ne.s32.totalorder %s68, %s84
      %p86 = scmp.eq.s32.totalorder %s34, 0
      %p87 = por %p85, %p86
      %s88 = ssub.s32 %s28, %s35
      %p89 = scmp.eq.s32.totalorder %s88, 0
      %s91 = sadd.s32 %s90, 1
      %s92 = scalar_select %p89, %s90, %s91
      %p95 = pneg %p89
      %p96 = scmp.eq.s32.totalorder %s28, 1
      %p97 = por %p95, %p96
      %p98 = scmp.ne.s32.totalorder %s90, %s93
      %p99 = scmp.eq.s32.totalorder %s28, 0
      %p100 = por %p98, %p99
      %p101 = scmp.ne.s32.totalorder %s90, %s93
      %p102 = scmp.eq.s32.totalorder %s33, 1
      %p103 = por %p101, %p102
      %p104 = scmp.ne.s32.totalorder %s93, %s94
      %p105 = scmp.eq.s32.totalorder %s33, 0
      %p106 = por %p104, %p105
      %p107 = scmp.ne.s32.totalorder %s93, %s94
      %p108 = scmp.eq.s32.totalorder %s34, 1
      %p109 = por %p107, %p108
      %p111 = scmp.ne.s32.totalorder %s94, %s110
      %p112 = scmp.eq.s32.totalorder %s34, 0
      %p113 = por %p111, %p112
      %s115 = sadd.s32 %s114, 1
      %p118 = scmp.eq.s32.totalorder %s28, 1
      %p119 = scmp.ne.s32.totalorder %s114, %s116
      %p120 = scmp.eq.s32.totalorder %s28, 0
      %p121 = por %p119, %p120
      %p122 = scmp.ne.s32.totalorder %s114, %s116
      %p123 = scmp.eq.s32.totalorder %s33, 1
      %p124 = por %p122, %p123
      %p125 = scmp.ne.s32.totalorder %s116, %s117
      %p126 = scmp.eq.s32.totalorder %s33, 0
      %p127 = por %p125, %p126
      %p128 = scmp.ne.s32.totalorder %s116, %s117
      %p129 = scmp.eq.s32.totalorder %s34, 1
      %p130 = por %p128, %p129
      %p132 = scmp.ne.s32.totalorder %s117, %s131
      %p133 = scmp.eq.s32.totalorder %s34, 0
      %p134 = por %p132, %p133
      %s136 = sadd.s32 %s135, 1
      %p139 = scmp.eq.s32.totalorder %s28, 1
      %p140 = scmp.ne.s32.totalorder %s135, %s137
      %p141 = scmp.eq.s32.totalorder %s28, 0
      %p142 = por %p140, %p141
      %p143 = scmp.ne.s32.totalorder %s135, %s137
      %p144 = scmp.eq.s32.totalorder %s33, 1
      %p145 = por %p143, %p144
      %p146 = scmp.ne.s32.totalorder %s137, %s138
      %p147 = scmp.eq.s32.totalorder %s33, 0
      %p148 = por %p146, %p147
      %p149 = scmp.ne.s32.totalorder %s137, %s138
      %p150 = scmp.eq.s32.totalorder %s34, 1
      %p151 = por %p149, %p150
      %p153 = scmp.ne.s32.totalorder %s138, %s152
      %p154 = scmp.eq.s32.totalorder %s34, 0
      %p155 = por %p153, %p154
      %s157 = sadd.s32 %s156, 1
      %p160 = scmp.eq.s32.totalorder %s28, 1
      %p161 = scmp.ne.s32.totalorder %s156, %s158
      %p162 = scmp.eq.s32.totalorder %s28, 0
      %p163 = por %p161, %p162
      %p164 = scmp.ne.s32.totalorder %s156, %s158
      %p165 = scmp.eq.s32.totalorder %s33, 1
      %p166 = por %p164, %p165
      %p167 = scmp.ne.s32.totalorder %s158, %s159
      %p168 = scmp.eq.s32.totalorder %s33, 0
      %p169 = por %p167, %p168
      %p170 = scmp.ne.s32.totalorder %s158, %s159
      %p171 = scmp.eq.s32.totalorder %s34, 1
      %p172 = por %p170, %p171
      %p174 = scmp.ne.s32.totalorder %s159, %s173
      %p175 = scmp.eq.s32.totalorder %s34, 0
      %p176 = por %p174, %p175
      %s177 = ssub.s32 %s28, %s35
      %p178 = scmp.eq.s32.totalorder %s177, 0
      %s180 = sadd.s32 %s179, 1
      %s181 = scalar_select %p178, %s179, %s180
      %p184 = pneg %p178
      %p185 = scmp.eq.s32.totalorder %s28, 1
      %p186 = por %p184, %p185
      %p187 = scmp.ne.s32.totalorder %s179, %s182
      %p188 = scmp.eq.s32.totalorder %s28, 0
      %p189 = por %p187, %p188
      %p190 = scmp.ne.s32.totalorder %s179, %s182
      %p191 = scmp.eq.s32.totalorder %s33, 1
      %p192 = por %p190, %p191
      %p193 = scmp.ne.s32.totalorder %s182, %s183
      %p194 = scmp.eq.s32.totalorder %s33, 0
      %p195 = por %p193, %p194
      %p196 = scmp.ne.s32.totalorder %s182, %s183
      %p197 = scmp.eq.s32.totalorder %s34, 1
      %p198 = por %p196, %p197
      %p200 = scmp.ne.s32.totalorder %s183, %s199
      %p201 = scmp.eq.s32.totalorder %s34, 0
      %p202 = por %p200, %p201
      %s203 = ssub.s32 %s28, %s35
      %p204 = scmp.eq.s32.totalorder %s203, 0
      %s206 = sadd.s32 %s205, 1
      %s207 = scalar_select %p204, %s205, %s206
      %p210 = pneg %p204
      %p211 = scmp.eq.s32.totalorder %s28, 1
      %p212 = por %p210, %p211
      %p213 = scmp.ne.s32.totalorder %s205, %s208
      %p214 = scmp.eq.s32.totalorder %s28, 0
      %p215 = por %p213, %p214
      %p216 = scmp.ne.s32.totalorder %s205, %s208
      %p217 = scmp.eq.s32.totalorder %s33, 1
      %p218 = por %p216, %p217
      %p219 = scmp.ne.s32.totalorder %s208, %s209
      %p220 = scmp.eq.s32.totalorder %s33, 0
      %p221 = por %p219, %p220
      %p222 = scmp.ne.s32.totalorder %s208, %s209
      %p223 = scmp.eq.s32.totalorder %s34, 1
      %p224 = por %p222, %p223
      %p226 = scmp.ne.s32.totalorder %s209, %s225
      %p227 = scmp.eq.s32.totalorder %s34, 0
      %p228 = por %p226, %p227
      %p229 = scmp.le.s32.totalorder 1, %s28
      %p230 = scmp.lt.s32.totalorder %s28, 3
      %p231 = pnand %p229, %p230
      %p232 = pneg %p231
      // Predicated region
      $region9: #{tpu_custom_call.1} parent=5 // pred_check
        _
      $region10: #{tpu_custom_call.1} parent=5 // pred_check_branch
        %234 = sbr.rel (%p231) target = $region12
      $region11: #{tpu_custom_call.1} parent=5 // pred_region
        %s235 = ssub.s32 %s28, 1
        // Predicated region
        $region13: #{tpu_custom_call.1} parent=11 // pred_check
          %p236 = pneg %p127
        $region14: #{tpu_custom_call.1} parent=11 // pred_check_branch
          %238 = sbr.rel (%p236) target = $region16
        $region15: #{tpu_custom_call.1} parent=11 // pred_region
          %s240 = ssub.s32 512, 512
          %241 = vsyncadd [#allocation9], %s240
          %s242 = sshll.u32 [#allocation8], 4
          %s243 = int_to_ptr.vmem [resolvable:$true] %s242
          %248 = dma.hbm_to_vmem [thread:$0]  %s3, 512, %s243, [#allocation9], 128, 128, 8
        $region16: #{tpu_custom_call.1} parent=11 // pred_fallthru
          _
        // Predicated region
        $region17: #{tpu_custom_call.1} parent=11 // pred_check
          %p249 = pneg %p148
        $region18: #{tpu_custom_call.1} parent=11 // pred_check_branch
          %251 = sbr.rel (%p249) target = $region20
        $region19: #{tpu_custom_call.1} parent=11 // pred_region
          %s253 = ssub.s32 512, 512
          %254 = vsyncadd [#allocation9], %s253
          %s255 = sshll.u32 [#allocation10], 4
          %s256 = int_to_ptr.vmem [resolvable:$true] %s255
          %261 = dma.hbm_to_vmem [thread:$0]  %s4, 512, %s256, [#allocation9], 128, 128, 8
        $region20: #{tpu_custom_call.1} parent=11 // pred_fallthru
          _
        // Predicated region
        $region21: #{tpu_custom_call.1} parent=11 // pred_check
          %p262 = pneg %p169
        $region22: #{tpu_custom_call.1} parent=11 // pred_check_branch
          %264 = sbr.rel (%p262) target = $region24
        $region23: #{tpu_custom_call.1} parent=11 // pred_region
          %s266 = ssub.s32 512, 512
          %267 = vsyncadd [#allocation12], %s266
          %s268 = sshll.u32 [#allocation11], 4
          %s269 = int_to_ptr.vmem [resolvable:$true] %s268
          %274 = dma.hbm_to_vmem [thread:$0]  %s5, 512, %s269, [#allocation12], 128, 128, 8
        $region24: #{tpu_custom_call.1} parent=11 // pred_fallthru
          _
      $region12: #{tpu_custom_call.1} parent=5 // pred_fallthru
        _
      %p275 = scmp.lt.s32.totalorder %s28, 2
      // Predicated region
      $region25: #{tpu_custom_call.1} parent=5 // pred_check
        %p276 = pneg %p275
      $region26: #{tpu_custom_call.1} parent=5 // pred_check_branch
        %278 = sbr.rel (%p276) target = $region28
      $region27: #{tpu_custom_call.1} parent=5 // pred_region
        // Predicated region
        $region29: #{tpu_custom_call.1} parent=27 // pred_check
          %p279 = pneg %p48
        $region30: #{tpu_custom_call.1} parent=27 // pred_check_branch
          %281 = sbr.rel (%p279) target = $region32
        $region31: #{tpu_custom_call.1} parent=27 // pred_region
          %s282 = sand.u32 %s38, 1
          %s283 = scalar_lea.sflag [#allocation3], %s282
          %s284 = sand.u32 %s38, 1
          %s285 = smul.addr %s284, 8
          %s286 = scalar_lea.vmem [#allocation2], %s285
          %s288 = ssub.s32 128, 128
          %289 = vsyncadd %s283, %s288
          %s290 = smul.addr %s28, 128
          %s291 = scalar_lea.hbm %s0, %s290
          %s293 = sshll.u32 %s286, 4
          %s294 = int_to_ptr.vmem [resolvable:$true] %s293
          %296 = dma.hbm_to_vmem [thread:$0]  %s291, 128, %s294, %s283
        $region32: #{tpu_custom_call.1} parent=27 // pred_fallthru
          _
        // Predicated region
        $region33: #{tpu_custom_call.1} parent=27 // pred_check
          %p297 = pneg %p74
        $region34: #{tpu_custom_call.1} parent=27 // pred_check_branch
          %299 = sbr.rel (%p297) target = $region36
        $region35: #{tpu_custom_call.1} parent=27 // pred_region
          %s300 = sand.u32 %s28, 1
          %s301 = scalar_lea.sflag [#allocation6], %s300
          %s302 = sand.u32 %s64, 1
          %s303 = smul.addr %s302, 8
          %s304 = scalar_lea.vmem [#allocation5], %s303
          %s306 = ssub.s32 128, 128
          %307 = vsyncadd %s301, %s306
          %s308 = smul.addr %s28, 128
          %s309 = scalar_lea.hbm %s1, %s308
          %s311 = sshll.u32 %s304, 4
          %s312 = int_to_ptr.vmem [resolvable:$true] %s311
          %314 = dma.hbm_to_vmem [thread:$0]  %s309, 128, %s312, %s301
        $region36: #{tpu_custom_call.1} parent=27 // pred_fallthru
          _
        // Predicated region
        $region37: #{tpu_custom_call.1} parent=27 // pred_check
          %p315 = pneg %p100
        $region38: #{tpu_custom_call.1} parent=27 // pred_check_branch
          %317 = sbr.rel (%p315) target = $region40
        $region39: #{tpu_custom_call.1} parent=27 // pred_region
          %s318 = sand.u32 %s28, 1
          %s319 = scalar_lea.sflag [#allocation6], %s318
          %s320 = sand.u32 %s90, 1
          %s321 = smul.addr %s320, 8
          %s322 = scalar_lea.vmem [#allocation7], %s321
          %s324 = ssub.s32 128, 128
          %325 = vsyncadd %s319, %s324
          %s326 = smul.addr %s28, 128
          %s327 = scalar_lea.hbm %s2, %s326
          %s329 = sshll.u32 %s322, 4
          %s330 = int_to_ptr.vmem [resolvable:$true] %s329
          %332 = dma.hbm_to_vmem [thread:$0]  %s327, 128, %s330, %s319
        $region40: #{tpu_custom_call.1} parent=27 // pred_fallthru
          _
      $region28: #{tpu_custom_call.1} parent=5 // pred_fallthru
        _
      %p333 = scmp.le.s32.totalorder 1, %s28
      %p334 = scmp.lt.s32.totalorder %s28, 3
      %p335 = pnand %p333, %p334
      %p336 = pneg %p335
      // Predicated region
      $region41: #{tpu_custom_call.1} parent=5 // pred_check
        _
      $region42: #{tpu_custom_call.1} parent=5 // pred_check_branch
        %338 = sbr.rel (%p335) target = $region44
      $region43: #{tpu_custom_call.1} parent=5 // pred_region
        %s339 = ssub.s32 %s28, 1
        %s340 = sand.u32 %s41, 1
        %s341 = scalar_lea.sflag [#allocation3], %s340
        %s342 = sand.u32 %s41, 1
        %s343 = smul.addr %s342, 8
        %s344 = scalar_lea.vmem [#allocation2], %s343
        // Predicated region
        $region45: #{tpu_custom_call.1} parent=43 // pred_check
          %p345 = pneg %p54
        $region46: #{tpu_custom_call.1} parent=43 // pred_check_branch
          %347 = sbr.rel (%p345) target = $region48
        $region47: #{tpu_custom_call.1} parent=43 // pred_region
          %348 = dma.done %s341, 128
        $region48: #{tpu_custom_call.1} parent=43 // pred_fallthru
          _
        %s349 = sand.u32 %s33, 1
        %s350 = scalar_lea.sflag [#allocation6], %s349
        %s351 = sand.u32 %s67, 1
        %s352 = smul.addr %s351, 8
        %s353 = scalar_lea.vmem [#allocation5], %s352
        // Predicated region
        $region49: #{tpu_custom_call.1} parent=43 // pred_check
          %p354 = pneg %p80
        $region50: #{tpu_custom_call.1} parent=43 // pred_check_branch
          %356 = sbr.rel (%p354) target = $region52
        $region51: #{tpu_custom_call.1} parent=43 // pred_region
          %357 = dma.done %s350, 128
        $region52: #{tpu_custom_call.1} parent=43 // pred_fallthru
          _
        %s358 = sand.u32 %s33, 1
        %s359 = scalar_lea.sflag [#allocation6], %s358
        %s360 = sand.u32 %s93, 1
        %s361 = smul.addr %s360, 8
        %s362 = scalar_lea.vmem [#allocation7], %s361
        // Predicated region
        $region53: #{tpu_custom_call.1} parent=43 // pred_check
          %p363 = pneg %p106
        $region54: #{tpu_custom_call.1} parent=43 // pred_check_branch
          %365 = sbr.rel (%p363) target = $region56
        $region55: #{tpu_custom_call.1} parent=43 // pred_region
          %366 = dma.done %s359, 128
        $region56: #{tpu_custom_call.1} parent=43 // pred_fallthru
          _
        // Predicated region
        $region57: #{tpu_custom_call.1} parent=43 // pred_check
          %p367 = pneg %p127
        $region58: #{tpu_custom_call.1} parent=43 // pred_check_branch
          %369 = sbr.rel (%p367) target = $region60
        $region59: #{tpu_custom_call.1} parent=43 // pred_region
          %370 = dma.done [#allocation9], 512
        $region60: #{tpu_custom_call.1} parent=43 // pred_fallthru
          _
        // Predicated region
        $region61: #{tpu_custom_call.1} parent=43 // pred_check
          %p371 = pneg %p148
        $region62: #{tpu_custom_call.1} parent=43 // pred_check_branch
          %373 = sbr.rel (%p371) target = $region64
        $region63: #{tpu_custom_call.1} parent=43 // pred_region
          %374 = dma.done [#allocation9], 512
        $region64: #{tpu_custom_call.1} parent=43 // pred_fallthru
          _
        // Predicated region
        $region65: #{tpu_custom_call.1} parent=43 // pred_check
          %p375 = pneg %p169
        $region66: #{tpu_custom_call.1} parent=43 // pred_check_branch
          %377 = sbr.rel (%p375) target = $region68
        $region67: #{tpu_custom_call.1} parent=43 // pred_region
          %378 = dma.done [#allocation12], 512
        $region68: #{tpu_custom_call.1} parent=43 // pred_fallthru
          _
        %s379 = sand.u32 %s41, 1
        %s380 = scalar_lea.sflag [#allocation3], %s379
        %s381 = sand.u32 %s41, 1
        %s382 = smul.addr %s381, 8
        %s383 = scalar_lea.vmem [#allocation2], %s382
        %p384 = pneg %p54
        %p385 = pneg %p51
        %s386 = sand.u32 %s33, 1
        %s387 = scalar_lea.sflag [#allocation6], %s386
        %s388 = sand.u32 %s67, 1
        %s389 = smul.addr %s388, 8
        %s390 = scalar_lea.vmem [#allocation5], %s389
        %p391 = pneg %p80
        %p392 = pneg %p77
        %s393 = sand.u32 %s33, 1
        %s394 = scalar_lea.sflag [#allocation6], %s393
        %s395 = sand.u32 %s93, 1
        %s396 = smul.addr %s395, 8
        %s397 = scalar_lea.vmem [#allocation7], %s396
        %p398 = pneg %p106
        %p399 = pneg %p103
        %p400 = pneg %p127
        %p401 = pneg %p124
        %p402 = pneg %p148
        %p403 = pneg %p145
        %p404 = pneg %p169
        %p405 = pneg %p166
        %p406 = pneg %p195
        %p407 = pneg %p192
        %s408 = sand.u32 %s182, 1
        %s409 = scalar_lea.sflag [#allocation4], %s408
        %s410 = sand.u32 %s182, 1
        %s411 = smul.addr %s410, 8
        %s412 = scalar_lea.vmem [#allocation13], %s411
        %p413 = pneg %p221
        %p414 = pneg %p218
        %s415 = sand.u32 %s208, 1
        %s416 = scalar_lea.sflag [#allocation15], %s415
        %s417 = sand.u32 %s208, 1
        %s418 = smul.addr %s417, 32
        %s419 = scalar_lea.vmem [#allocation14], %s418
        %v420 = vld [vmem:[%s344] sm:$0xff]
        %v421 = vld [vmem:[%s353] sm:$0xff]
        %v422 = vld [vmem:[%s362] sm:$0xff]
        %v423 = vld [vmem:[#allocation8] sm:$0xff]
        %v424 = vld [vmem:[#allocation8 + $0x8] sm:$0xff]
        %v425 = vld [vmem:[#allocation8 + $0x10] sm:$0xff]
        %v426 = vld [vmem:[#allocation8 + $0x18] sm:$0xff]
        %vm427 = vcmask 261120
        %v429 = vsel %vm427, %v420, 0
        %v432 = vsel %vm427, %v423, 0
        %v435 = vsel %vm427, %v424, 0
        %v438 = vsel %vm427, %v425, 0
        %v441 = vsel %vm427, %v426, 0
        %443 = vmatprep.subr.mxu0 0.0
        %444 = vmatpush1.xpose.msra.mxu0 %v432
        %445 = vmatprep.subr.mxu0 0.0
        %446 = vmatpush1.xpose.msra.mxu0 %v435
        %447 = vmatprep.subr.mxu0 0.0
        %448 = vmatpush1.xpose.msra.mxu0 %v438
        %449 = vmatprep.subr.mxu0 0.0
        %450 = vmatpush1.xpose.msra.mxu0 %v441
        %451 = vmatprep.subr.mxu0 0.0
        %452 = vmatpush1.xpose.msra.mxu0 0.0
        %453 = vmatprep.subr.mxu0 0.0
        %454 = vmatpush1.xpose.msra.mxu0 0.0
        %455 = vmatprep.subr.mxu0 0.0
        %456 = vmatpush1.xpose.msra.mxu0 0.0
        %457 = vmatprep.subr.mxu0 0.0
        %458 = vmatpush1.xpose.msra.mxu0 0.0
        %459 = vmatprep.subr.mxu0 0.0
        %460 = vmatpush1.xpose.msra.mxu0 0.0
        %461 = vmatprep.subr.mxu0 0.0
        %462 = vmatpush1.xpose.msra.mxu0 0.0
        %463 = vmatprep.subr.mxu0 0.0
        %464 = vmatpush1.xpose.msra.mxu0 0.0
        %465 = vmatprep.subr.mxu0 0.0
        %466 = vmatpush1.xpose.msra.mxu0 0.0
        %467 = vmatprep.subr.mxu0 0.0
        %468 = vmatpush1.xpose.msra.mxu0 0.0
        %469 = vmatprep.subr.mxu0 0.0
        %470 = vmatpush1.xpose.msra.mxu0 0.0
        %471 = vmatprep.subr.mxu0 0.0
        %472 = vmatpush1.xpose.msra.mxu0 0.0
        %473 = vmatprep.subr.mxu0 0.0
        %474 = vmatpush1.xpose.msra.mxu0 0.0
        %475 = vmatprep.subr.mxu0 0.0
        %476 = vmatpush1.xpose.msra.mxu0 0.0
        %477 = vmatprep.subr.mxu0 0.0
        %478 = vmatpush1.xpose.msra.mxu0 0.0
        %479 = vmatprep.subr.mxu0 0.0
        %480 = vmatpush1.xpose.msra.mxu0 0.0
        %481 = vmatprep.subr.mxu0 0.0
        %482 = vmatpush1.xpose.msra.mxu0 0.0
        %483 = vmatprep.subr.mxu0 0.0
        %484 = vmatpush1.xpose.msra.mxu0 0.0
        %485 = vmatprep.subr.mxu0 0.0
        %486 = vmatpush1.xpose.msra.mxu0 0.0
        %487 = vmatprep.subr.mxu0 0.0
        %488 = vmatpush1.xpose.msra.mxu0 0.0
        %489 = vmatprep.subr.mxu0 0.0
        %490 = vmatpush1.xpose.msra.mxu0 0.0
        %491 = vmatprep.subr.mxu0 0.0
        %492 = vmatpush1.xpose.msra.mxu0 0.0
        %493 = vmatprep.subr.mxu0 0.0
        %494 = vmatpush1.xpose.msra.mxu0 0.0
        %495 = vmatprep.subr.mxu0 0.0
        %496 = vmatpush1.xpose.msra.mxu0 0.0
        %497 = vmatprep.subr.mxu0 0.0
        %498 = vmatpush1.xpose.msra.mxu0 0.0
        %499 = vmatprep.subr.mxu0 0.0
        %500 = vmatpush1.xpose.msra.mxu0 0.0
        %501 = vmatprep.subr.mxu0 0.0
        %502 = vmatpush1.xpose.msra.mxu0 0.0
        %503 = vmatprep.subr.mxu0 0.0
        %504 = vmatpush1.xpose.msra.mxu0 0.0
        %505 = vmatprep.subr.mxu0 0.0
        %506 = vmatpush1.xpose.msra.mxu0 0.0
        %507 = vmatprep.mubr.f32.mxu0 0.0
        %508 = vmatmul.mubr.f32.gmra.mrb[0].mxu0 %v429
        %v509 = vpop.f32.mrb[0].mxu0
        %v510 = vadd.f32 0.0, %v509
        %v511 = vpop.f32.mrb[0].mxu0
        %512 = vdwg.mxu0
        %v513 = vld [vmem:[#allocation10] sm:$0xff]
        %v514 = vld [vmem:[#allocation10 + $0x8] sm:$0xff]
        %v515 = vld [vmem:[#allocation10 + $0x10] sm:$0xff]
        %v516 = vld [vmem:[#allocation10 + $0x18] sm:$0xff]
        %v518 = vsel %vm427, %v421, 0
        %v521 = vsel %vm427, %v513, 0
        %v524 = vsel %vm427, %v514, 0
        %v527 = vsel %vm427, %v515, 0
        %v530 = vsel %vm427, %v516, 0
        %532 = vmatprep.subr.mxu0 0.0
        %533 = vmatpush1.xpose.msra.mxu0 %v521
        %534 = vmatprep.subr.mxu0 0.0
        %535 = vmatpush1.xpose.msra.mxu0 %v524
        %536 = vmatprep.subr.mxu0 0.0
        %537 = vmatpush1.xpose.msra.mxu0 %v527
        %538 = vmatprep.subr.mxu0 0.0
        %539 = vmatpush1.xpose.msra.mxu0 %v530
        %540 = vmatprep.subr.mxu0 0.0
        %541 = vmatpush1.xpose.msra.mxu0 0.0
        %542 = vmatprep.subr.mxu0 0.0
        %543 = vmatpush1.xpose.msra.mxu0 0.0
        %544 = vmatprep.subr.mxu0 0.0
        %545 = vmatpush1.xpose.msra.mxu0 0.0
        %546 = vmatprep.subr.mxu0 0.0
        %547 = vmatpush1.xpose.msra.mxu0 0.0
        %548 = vmatprep.subr.mxu0 0.0
        %549 = vmatpush1.xpose.msra.mxu0 0.0
        %550 = vmatprep.subr.mxu0 0.0
        %551 = vmatpush1.xpose.msra.mxu0 0.0
        %552 = vmatprep.subr.mxu0 0.0
        %553 = vmatpush1.xpose.msra.mxu0 0.0
        %554 = vmatprep.subr.mxu0 0.0
        %555 = vmatpush1.xpose.msra.mxu0 0.0
        %556 = vmatprep.subr.mxu0 0.0
        %557 = vmatpush1.xpose.msra.mxu0 0.0
        %558 = vmatprep.subr.mxu0 0.0
        %559 = vmatpush1.xpose.msra.mxu0 0.0
        %560 = vmatprep.subr.mxu0 0.0
        %561 = vmatpush1.xpose.msra.mxu0 0.0
        %562 = vmatprep.subr.mxu0 0.0
        %563 = vmatpush1.xpose.msra.mxu0 0.0
        %564 = vmatprep.subr.mxu0 0.0
        %565 = vmatpush1.xpose.msra.mxu0 0.0
        %566 = vmatprep.subr.mxu0 0.0
        %567 = vmatpush1.xpose.msra.mxu0 0.0
        %568 = vmatprep.subr.mxu0 0.0
        %569 = vmatpush1.xpose.msra.mxu0 0.0
        %570 = vmatprep.subr.mxu0 0.0
        %571 = vmatpush1.xpose.msra.mxu0 0.0
        %572 = vmatprep.subr.mxu0 0.0
        %573 = vmatpush1.xpose.msra.mxu0 0.0
        %574 = vmatprep.subr.mxu0 0.0
        %575 = vmatpush1.xpose.msra.mxu0 0.0
        %576 = vmatprep.subr.mxu0 0.0
        %577 = vmatpush1.xpose.msra.mxu0 0.0
        %578 = vmatprep.subr.mxu0 0.0
        %579 = vmatpush1.xpose.msra.mxu0 0.0
        %580 = vmatprep.subr.mxu0 0.0
        %581 = vmatpush1.xpose.msra.mxu0 0.0
        %582 = vmatprep.subr.mxu0 0.0
        %583 = vmatpush1.xpose.msra.mxu0 0.0
        %584 = vmatprep.subr.mxu0 0.0
        %585 = vmatpush1.xpose.msra.mxu0 0.0
        %586 = vmatprep.subr.mxu0 0.0
        %587 = vmatpush1.xpose.msra.mxu0 0.0
        %588 = vmatprep.subr.mxu0 0.0
        %589 = vmatpush1.xpose.msra.mxu0 0.0
        %590 = vmatprep.subr.mxu0 0.0
        %591 = vmatpush1.xpose.msra.mxu0 0.0
        %592 = vmatprep.subr.mxu0 0.0
        %593 = vmatpush1.xpose.msra.mxu0 0.0
        %594 = vmatprep.subr.mxu0 0.0
        %595 = vmatpush1.xpose.msra.mxu0 0.0
        %596 = vmatprep.mubr.f32.mxu0 0.0
        %597 = vmatmul.mubr.f32.gmra.mrb[0].mxu0 %v518
        %v598 = vpop.f32.mrb[0].mxu0
        %v599 = vadd.f32 0.0, %v598
        %v600 = vpop.f32.mrb[0].mxu0
        %601 = vdwg.mxu0
        %v602 = vld [vmem:[#allocation11] sm:$0xff]
        %v603 = vld [vmem:[#allocation11 + $0x8] sm:$0xff]
        %v604 = vld [vmem:[#allocation11 + $0x10] sm:$0xff]
        %v605 = vld [vmem:[#allocation11 + $0x18] sm:$0xff]
        %v607 = vsel %vm427, %v422, 0
        %v610 = vsel %vm427, %v602, 0
        %v613 = vsel %vm427, %v603, 0
        %v616 = vsel %vm427, %v604, 0
        %v619 = vsel %vm427, %v605, 0
        %621 = vmatprep.subr.mxu0 0.0
        %622 = vmatpush1.xpose.msra.mxu0 %v610
        %623 = vmatprep.subr.mxu0 0.0
        %624 = vmatpush1.xpose.msra.mxu0 %v613
        %625 = vmatprep.subr.mxu0 0.0
        %626 = vmatpush1.xpose.msra.mxu0 %v616
        %627 = vmatprep.subr.mxu0 0.0
        %628 = vmatpush1.xpose.msra.mxu0 %v619
        %629 = vmatprep.subr.mxu0 0.0
        %630 = vmatpush1.xpose.msra.mxu0 0.0
        %631 = vmatprep.subr.mxu0 0.0
        %632 = vmatpush1.xpose.msra.mxu0 0.0
        %633 = vmatprep.subr.mxu0 0.0
        %634 = vmatpush1.xpose.msra.mxu0 0.0
        %635 = vmatprep.subr.mxu0 0.0
        %636 = vmatpush1.xpose.msra.mxu0 0.0
        %637 = vmatprep.subr.mxu0 0.0
        %638 = vmatpush1.xpose.msra.mxu0 0.0
        %639 = vmatprep.subr.mxu0 0.0
        %640 = vmatpush1.xpose.msra.mxu0 0.0
        %641 = vmatprep.subr.mxu0 0.0
        %642 = vmatpush1.xpose.msra.mxu0 0.0
        %643 = vmatprep.subr.mxu0 0.0
        %644 = vmatpush1.xpose.msra.mxu0 0.0
        %645 = vmatprep.subr.mxu0 0.0
        %646 = vmatpush1.xpose.msra.mxu0 0.0
        %647 = vmatprep.subr.mxu0 0.0
        %648 = vmatpush1.xpose.msra.mxu0 0.0
        %649 = vmatprep.subr.mxu0 0.0
        %650 = vmatpush1.xpose.msra.mxu0 0.0
        %651 = vmatprep.subr.mxu0 0.0
        %652 = vmatpush1.xpose.msra.mxu0 0.0
        %653 = vmatprep.subr.mxu0 0.0
        %654 = vmatpush1.xpose.msra.mxu0 0.0
        %655 = vmatprep.subr.mxu0 0.0
        %656 = vmatpush1.xpose.msra.mxu0 0.0
        %657 = vmatprep.subr.mxu0 0.0
        %658 = vmatpush1.xpose.msra.mxu0 0.0
        %659 = vmatprep.subr.mxu0 0.0
        %660 = vmatpush1.xpose.msra.mxu0 0.0
        %661 = vmatprep.subr.mxu0 0.0
        %662 = vmatpush1.xpose.msra.mxu0 0.0
        %663 = vmatprep.subr.mxu0 0.0
        %664 = vmatpush1.xpose.msra.mxu0 0.0
        %665 = vmatprep.subr.mxu0 0.0
        %666 = vmatpush1.xpose.msra.mxu0 0.0
        %667 = vmatprep.subr.mxu0 0.0
        %668 = vmatpush1.xpose.msra.mxu0 0.0
        %669 = vmatprep.subr.mxu0 0.0
        %670 = vmatpush1.xpose.msra.mxu0 0.0
        %671 = vmatprep.subr.mxu0 0.0
        %672 = vmatpush1.xpose.msra.mxu0 0.0
        %673 = vmatprep.subr.mxu0 0.0
        %674 = vmatpush1.xpose.msra.mxu0 0.0
        %675 = vmatprep.subr.mxu0 0.0
        %676 = vmatpush1.xpose.msra.mxu0 0.0
        %677 = vmatprep.subr.mxu0 0.0
        %678 = vmatpush1.xpose.msra.mxu0 0.0
        %679 = vmatprep.subr.mxu0 0.0
        %680 = vmatpush1.xpose.msra.mxu0 0.0
        %681 = vmatprep.subr.mxu0 0.0
        %682 = vmatpush1.xpose.msra.mxu0 0.0
        %683 = vmatprep.subr.mxu0 0.0
        %684 = vmatpush1.xpose.msra.mxu0 0.0
        %685 = vmatprep.mubr.f32.mxu0 0.0
        %686 = vmatmul.mubr.f32.gmra.mrb[0].mxu0 %v607
        %v687 = vpop.f32.mrb[0].mxu0
        %v688 = vadd.f32 0.0, %v687
        %v689 = vpop.f32.mrb[0].mxu0
        %690 = vdwg.mxu0
        %v691 = vmul.f32 %v510, 0.35355338
        %vm692 = vcmask 64512
        %v694 = vsel %vm692, %v691, 0
        %v697 = vsel %vm692, %v599, 0
        %699 = vmatprep.subr.mxu0 0.0
        %700 = vmatpush1.xpose.msra.mxu0 %v697
        %701 = vmatprep.subr.mxu0 0.0
        %702 = vmatpush1.xpose.msra.mxu0 0.0
        %703 = vmatprep.subr.mxu0 0.0
        %704 = vmatpush1.xpose.msra.mxu0 0.0
        %705 = vmatprep.subr.mxu0 0.0
        %706 = vmatpush1.xpose.msra.mxu0 0.0
        %707 = vmatprep.subr.mxu0 0.0
        %708 = vmatpush1.xpose.msra.mxu0 0.0
        %709 = vmatprep.subr.mxu0 0.0
        %710 = vmatpush1.xpose.msra.mxu0 0.0
        %711 = vmatprep.subr.mxu0 0.0
        %712 = vmatpush1.xpose.msra.mxu0 0.0
        %713 = vmatprep.subr.mxu0 0.0
        %714 = vmatpush1.xpose.msra.mxu0 0.0
        %715 = vmatprep.subr.mxu0 0.0
        %716 = vmatpush1.xpose.msra.mxu0 0.0
        %717 = vmatprep.subr.mxu0 0.0
        %718 = vmatpush1.xpose.msra.mxu0 0.0
        %719 = vmatprep.subr.mxu0 0.0
        %720 = vmatpush1.xpose.msra.mxu0 0.0
        %721 = vmatprep.subr.mxu0 0.0
        %722 = vmatpush1.xpose.msra.mxu0 0.0
        %723 = vmatprep.subr.mxu0 0.0
        %724 = vmatpush1.xpose.msra.mxu0 0.0
        %725 = vmatprep.subr.mxu0 0.0
        %726 = vmatpush1.xpose.msra.mxu0 0.0
        %727 = vmatprep.subr.mxu0 0.0
        %728 = vmatpush1.xpose.msra.mxu0 0.0
        %729 = vmatprep.subr.mxu0 0.0
        %730 = vmatpush1.xpose.msra.mxu0 0.0
        %731 = vmatprep.subr.mxu0 0.0
        %732 = vmatpush1.xpose.msra.mxu0 0.0
        %733 = vmatprep.subr.mxu0 0.0
        %734 = vmatpush1.xpose.msra.mxu0 0.0
        %735 = vmatprep.subr.mxu0 0.0
        %736 = vmatpush1.xpose.msra.mxu0 0.0
        %737 = vmatprep.subr.mxu0 0.0
        %738 = vmatpush1.xpose.msra.mxu0 0.0
        %739 = vmatprep.subr.mxu0 0.0
        %740 = vmatpush1.xpose.msra.mxu0 0.0
        %741 = vmatprep.subr.mxu0 0.0
        %742 = vmatpush1.xpose.msra.mxu0 0.0
        %743 = vmatprep.subr.mxu0 0.0
        %744 = vmatpush1.xpose.msra.mxu0 0.0
        %745 = vmatprep.subr.mxu0 0.0
        %746 = vmatpush1.xpose.msra.mxu0 0.0
        %747 = vmatprep.subr.mxu0 0.0
        %748 = vmatpush1.xpose.msra.mxu0 0.0
        %749 = vmatprep.subr.mxu0 0.0
        %750 = vmatpush1.xpose.msra.mxu0 0.0
        %751 = vmatprep.subr.mxu0 0.0
        %752 = vmatpush1.xpose.msra.mxu0 0.0
        %753 = vmatprep.subr.mxu0 0.0
        %754 = vmatpush1.xpose.msra.mxu0 0.0
        %755 = vmatprep.subr.mxu0 0.0
        %756 = vmatpush1.xpose.msra.mxu0 0.0
        %757 = vmatprep.subr.mxu0 0.0
        %758 = vmatpush1.xpose.msra.mxu0 0.0
        %759 = vmatprep.subr.mxu0 0.0
        %760 = vmatpush1.xpose.msra.mxu0 0.0
        %761 = vmatprep.subr.mxu0 0.0
        %762 = vmatpush1.xpose.msra.mxu0 0.0
        %763 = vmatprep.mubr.f32.mxu0 0.0
        %764 = vmatmul.mubr.f32.gmra.mrb[0].mxu0 %v694
        %v765 = vpop.f32.mrb[0].mxu0
        %v766 = vadd.f32 0.0, %v765
        %v767 = vpop.f32.mrb[0].mxu0
        %768 = vdwg.mxu0
        %v769 = vsel %vm692, %v766, -inf
        %770 = vmax.xlane.f32.xlu0 %v769
        %v771 = vpop.xlane.xlu0 %770
        %v772 = vsub.f32 %v766, %v771
        %v773 = vmul.f32 %v772, 1.442695
        %v774 = vpow.pop %v773
        %v775 = vsel %vm692, %v774, 0.0
        %776 = vadd.xlane.f32.xlu0 %v775
        %v777 = vpop.xlane.xlu0 %776
        %v778 = vrcp.pop %v777
        %v779 = vmul.f32 %v774, %v778
        %780 = vst.msk [vmem:[%s419] sm:$0xff] %vm692, %v779
        %v782 = vsel %vm692, %v779, 0
        %784 = vmatprep.subr.mxu0 0.0
        %785 = vmatpush1.msra.mxu0 %v688
        %786 = vmatprep.subr.mxu0 0.0
        %787 = vmatpush1.msra.mxu0 0.0
        %788 = vmatprep.subr.mxu0 0.0
        %789 = vmatpush1.msra.mxu0 0.0
        %790 = vmatprep.subr.mxu0 0.0
        %791 = vmatpush1.msra.mxu0 0.0
        %792 = vmatprep.subr.mxu0 0.0
        %793 = vmatpush1.msra.mxu0 0.0
        %794 = vmatprep.subr.mxu0 0.0
        %795 = vmatpush1.msra.mxu0 0.0
        %796 = vmatprep.subr.mxu0 0.0
        %797 = vmatpush1.msra.mxu0 0.0
        %798 = vmatprep.subr.mxu0 0.0
        %799 = vmatpush1.msra.mxu0 0.0
        %800 = vmatprep.subr.mxu0 0.0
        %801 = vmatpush1.msra.mxu0 0.0
        %802 = vmatprep.subr.mxu0 0.0
        %803 = vmatpush1.msra.mxu0 0.0
        %804 = vmatprep.subr.mxu0 0.0
        %805 = vmatpush1.msra.mxu0 0.0
        %806 = vmatprep.subr.mxu0 0.0
        %807 = vmatpush1.msra.mxu0 0.0
        %808 = vmatprep.subr.mxu0 0.0
        %809 = vmatpush1.msra.mxu0 0.0
        %810 = vmatprep.subr.mxu0 0.0
        %811 = vmatpush1.msra.mxu0 0.0
        %812 = vmatprep.subr.mxu0 0.0
        %813 = vmatpush1.msra.mxu0 0.0
        %814 = vmatprep.subr.mxu0 0.0
        %815 = vmatpush1.msra.mxu0 0.0
        %816 = vmatprep.subr.mxu0 0.0
        %817 = vmatpush1.msra.mxu0 0.0
        %818 = vmatprep.subr.mxu0 0.0
        %819 = vmatpush1.msra.mxu0 0.0
        %820 = vmatprep.subr.mxu0 0.0
        %821 = vmatpush1.msra.mxu0 0.0
        %822 = vmatprep.subr.mxu0 0.0
        %823 = vmatpush1.msra.mxu0 0.0
        %824 = vmatprep.subr.mxu0 0.0
        %825 = vmatpush1.msra.mxu0 0.0
        %826 = vmatprep.subr.mxu0 0.0
        %827 = vmatpush1.msra.mxu0 0.0
        %828 = vmatprep.subr.mxu0 0.0
        %829 = vmatpush1.msra.mxu0 0.0
        %830 = vmatprep.subr.mxu0 0.0
        %831 = vmatpush1.msra.mxu0 0.0
        %832 = vmatprep.subr.mxu0 0.0
        %833 = vmatpush1.msra.mxu0 0.0
        %834 = vmatprep.subr.mxu0 0.0
        %835 = vmatpush1.msra.mxu0 0.0
        %836 = vmatprep.subr.mxu0 0.0
        %837 = vmatpush1.msra.mxu0 0.0
        %838 = vmatprep.subr.mxu0 0.0
        %839 = vmatpush1.msra.mxu0 0.0
        %840 = vmatprep.subr.mxu0 0.0
        %841 = vmatpush1.msra.mxu0 0.0
        %842 = vmatprep.subr.mxu0 0.0
        %843 = vmatpush1.msra.mxu0 0.0
        %844 = vmatprep.subr.mxu0 0.0
        %845 = vmatpush1.msra.mxu0 0.0
        %846 = vmatprep.subr.mxu0 0.0
        %847 = vmatpush1.msra.mxu0 0.0
        %848 = vmatprep.mubr.f32.mxu0 0.0
        %849 = vmatmul.mubr.f32.gmra.mrb[0].mxu0 %v782
        %v850 = vpop.f32.mrb[0].mxu0
        %v851 = vadd.f32 0.0, %v850
        %v852 = vpop.f32.mrb[0].mxu0
        %853 = vdwg.mxu0
        %854 = vrot.lane.b32.xlu0 %v691, 120
        %v855 = vpop.permute.xlu0 %854
        %856 = vrot.lane.b32.xlu0 %v599, 120
        %v857 = vpop.permute.xlu0 %856
        %v858 = vsel %vm692, %v855, 0
        %v860 = vsel %vm692, %v857, 0
        %862 = vmatprep.subr.mxu0 0.0
        %863 = vmatpush1.xpose.msra.mxu0 %v860
        %864 = vmatprep.subr.mxu0 0.0
        %865 = vmatpush1.xpose.msra.mxu0 0.0
        %866 = vmatprep.subr.mxu0 0.0
        %867 = vmatpush1.xpose.msra.mxu0 0.0
        %868 = vmatprep.subr.mxu0 0.0
        %869 = vmatpush1.xpose.msra.mxu0 0.0
        %870 = vmatprep.subr.mxu0 0.0
        %871 = vmatpush1.xpose.msra.mxu0 0.0
        %872 = vmatprep.subr.mxu0 0.0
        %873 = vmatpush1.xpose.msra.mxu0 0.0
        %874 = vmatprep.subr.mxu0 0.0
        %875 = vmatpush1.xpose.msra.mxu0 0.0
        %876 = vmatprep.subr.mxu0 0.0
        %877 = vmatpush1.xpose.msra.mxu0 0.0
        %878 = vmatprep.subr.mxu0 0.0
        %879 = vmatpush1.xpose.msra.mxu0 0.0
        %880 = vmatprep.subr.mxu0 0.0
        %881 = vmatpush1.xpose.msra.mxu0 0.0
        %882 = vmatprep.subr.mxu0 0.0
        %883 = vmatpush1.xpose.msra.mxu0 0.0
        %884 = vmatprep.subr.mxu0 0.0
        %885 = vmatpush1.xpose.msra.mxu0 0.0
        %886 = vmatprep.subr.mxu0 0.0
        %887 = vmatpush1.xpose.msra.mxu0 0.0
        %888 = vmatprep.subr.mxu0 0.0
        %889 = vmatpush1.xpose.msra.mxu0 0.0
        %890 = vmatprep.subr.mxu0 0.0
        %891 = vmatpush1.xpose.msra.mxu0 0.0
        %892 = vmatprep.subr.mxu0 0.0
        %893 = vmatpush1.xpose.msra.mxu0 0.0
        %894 = vmatprep.subr.mxu0 0.0
        %895 = vmatpush1.xpose.msra.mxu0 0.0
        %896 = vmatprep.subr.mxu0 0.0
        %897 = vmatpush1.xpose.msra.mxu0 0.0
        %898 = vmatprep.subr.mxu0 0.0
        %899 = vmatpush1.xpose.msra.mxu0 0.0
        %900 = vmatprep.subr.mxu0 0.0
        %901 = vmatpush1.xpose.msra.mxu0 0.0
        %902 = vmatprep.subr.mxu0 0.0
        %903 = vmatpush1.xpose.msra.mxu0 0.0
        %904 = vmatprep.subr.mxu0 0.0
        %905 = vmatpush1.xpose.msra.mxu0 0.0
        %906 = vmatprep.subr.mxu0 0.0
        %907 = vmatpush1.xpose.msra.mxu0 0.0
        %908 = vmatprep.subr.mxu0 0.0
        %909 = vmatpush1.xpose.msra.mxu0 0.0
        %910 = vmatprep.subr.mxu0 0.0
        %911 = vmatpush1.xpose.msra.mxu0 0.0
        %912 = vmatprep.subr.mxu0 0.0
        %913 = vmatpush1.xpose.msra.mxu0 0.0
        %914 = vmatprep.subr.mxu0 0.0
        %915 = vmatpush1.xpose.msra.mxu0 0.0
        %916 = vmatprep.subr.mxu0 0.0
        %917 = vmatpush1.xpose.msra.mxu0 0.0
        %918 = vmatprep.subr.mxu0 0.0
        %919 = vmatpush1.xpose.msra.mxu0 0.0
        %920 = vmatprep.subr.mxu0 0.0
        %921 = vmatpush1.xpose.msra.mxu0 0.0
        %922 = vmatprep.subr.mxu0 0.0
        %923 = vmatpush1.xpose.msra.mxu0 0.0
        %924 = vmatprep.subr.mxu0 0.0
        %925 = vmatpush1.xpose.msra.mxu0 0.0
        %926 = vmatprep.mubr.f32.mxu0 0.0
        %927 = vmatmul.mubr.f32.gmra.mrb[0].mxu0 %v858
        %v928 = vpop.f32.mrb[0].mxu0
        %v929 = vadd.f32 0.0, %v928
        %v930 = vpop.f32.mrb[0].mxu0
        %931 = vdwg.mxu0
        %v932 = vsel %vm692, %v929, -inf
        %933 = vmax.xlane.f32.xlu0 %v932
        %v934 = vpop.xlane.xlu0 %933
        %v935 = vsub.f32 %v929, %v934
        %v936 = vmul.f32 %v935, 1.442695
        %v937 = vpow.pop %v936
        %v938 = vsel %vm692, %v937, 0.0
        %939 = vadd.xlane.f32.xlu0 %v938
        %v940 = vpop.xlane.xlu0 %939
        %v941 = vrcp.pop %v940
        %v942 = vmul.f32 %v937, %v941
        %s943 = scalar_lea.vmem %s419, 8 [#allocation14]
        %944 = vst.msk [vmem:[%s943] sm:$0xff] %vm692, %v942
        %946 = vrot.lane.b32.xlu0 %v688, 120
        %v947 = vpop.permute.xlu0 %946
        %v950 = vsel %vm692, %v942, 0
        %952 = vmatprep.subr.mxu0 0.0
        %953 = vmatpush1.msra.mxu0 %v947
        %954 = vmatprep.subr.mxu0 0.0
        %955 = vmatpush1.msra.mxu0 0.0
        %956 = vmatprep.subr.mxu0 0.0
        %957 = vmatpush1.msra.mxu0 0.0
        %958 = vmatprep.subr.mxu0 0.0
        %959 = vmatpush1.msra.mxu0 0.0
        %960 = vmatprep.subr.mxu0 0.0
        %961 = vmatpush1.msra.mxu0 0.0
        %962 = vmatprep.subr.mxu0 0.0
        %963 = vmatpush1.msra.mxu0 0.0
        %964 = vmatprep.subr.mxu0 0.0
        %965 = vmatpush1.msra.mxu0 0.0
        %966 = vmatprep.subr.mxu0 0.0
        %967 = vmatpush1.msra.mxu0 0.0
        %968 = vmatprep.subr.mxu0 0.0
        %969 = vmatpush1.msra.mxu0 0.0
        %970 = vmatprep.subr.mxu0 0.0
        %971 = vmatpush1.msra.mxu0 0.0
        %972 = vmatprep.subr.mxu0 0.0
        %973 = vmatpush1.msra.mxu0 0.0
        %974 = vmatprep.subr.mxu0 0.0
        %975 = vmatpush1.msra.mxu0 0.0
        %976 = vmatprep.subr.mxu0 0.0
        %977 = vmatpush1.msra.mxu0 0.0
        %978 = vmatprep.subr.mxu0 0.0
        %979 = vmatpush1.msra.mxu0 0.0
        %980 = vmatprep.subr.mxu0 0.0
        %981 = vmatpush1.msra.mxu0 0.0
        %982 = vmatprep.subr.mxu0 0.0
        %983 = vmatpush1.msra.mxu0 0.0
        %984 = vmatprep.subr.mxu0 0.0
        %985 = vmatpush1.msra.mxu0 0.0
        %986 = vmatprep.subr.mxu0 0.0
        %987 = vmatpush1.msra.mxu0 0.0
        %988 = vmatprep.subr.mxu0 0.0
        %989 = vmatpush1.msra.mxu0 0.0
        %990 = vmatprep.subr.mxu0 0.0
        %991 = vmatpush1.msra.mxu0 0.0
        %992 = vmatprep.subr.mxu0 0.0
        %993 = vmatpush1.msra.mxu0 0.0
        %994 = vmatprep.subr.mxu0 0.0
        %995 = vmatpush1.msra.mxu0 0.0
        %996 = vmatprep.subr.mxu0 0.0
        %997 = vmatpush1.msra.mxu0 0.0
        %998 = vmatprep.subr.mxu0 0.0
        %999 = vmatpush1.msra.mxu0 0.0
        %1000 = vmatprep.subr.mxu0 0.0
        %1001 = vmatpush1.msra.mxu0 0.0
        %1002 = vmatprep.subr.mxu0 0.0
        %1003 = vmatpush1.msra.mxu0 0.0
        %1004 = vmatprep.subr.mxu0 0.0
        %1005 = vmatpush1.msra.mxu0 0.0
        %1006 = vmatprep.subr.mxu0 0.0
        %1007 = vmatpush1.msra.mxu0 0.0
        %1008 = vmatprep.subr.mxu0 0.0
        %1009 = vmatpush1.msra.mxu0 0.0
        %1010 = vmatprep.subr.mxu0 0.0
        %1011 = vmatpush1.msra.mxu0 0.0
        %1012 = vmatprep.subr.mxu0 0.0
        %1013 = vmatpush1.msra.mxu0 0.0
        %1014 = vmatprep.subr.mxu0 0.0
        %1015 = vmatpush1.msra.mxu0 0.0
        %1016 = vmatprep.mubr.f32.mxu0 0.0
        %1017 = vmatmul.mubr.f32.gmra.mrb[0].mxu0 %v950
        %v1018 = vpop.f32.mrb[0].mxu0
        %v1019 = vadd.f32 0.0, %v1018
        %v1020 = vpop.f32.mrb[0].mxu0
        %1021 = vdwg.mxu0
        %1022 = vrot.lane.b32.xlu0 %v691, 112
        %v1023 = vpop.permute.xlu0 %1022
        %1024 = vrot.lane.b32.xlu0 %v599, 112
        %v1025 = vpop.permute.xlu0 %1024
        %v1026 = vsel %vm692, %v1023, 0
        %v1028 = vsel %vm692, %v1025, 0
        %1030 = vmatprep.subr.mxu0 0.0
        %1031 = vmatpush1.xpose.msra.mxu0 %v1028
        %1032 = vmatprep.subr.mxu0 0.0
        %1033 = vmatpush1.xpose.msra.mxu0 0.0
        %1034 = vmatprep.subr.mxu0 0.0
        %1035 = vmatpush1.xpose.msra.mxu0 0.0
        %1036 = vmatprep.subr.mxu0 0.0
        %1037 = vmatpush1.xpose.msra.mxu0 0.0
        %1038 = vmatprep.subr.mxu0 0.0
        %1039 = vmatpush1.xpose.msra.mxu0 0.0
        %1040 = vmatprep.subr.mxu0 0.0
        %1041 = vmatpush1.xpose.msra.mxu0 0.0
        %1042 = vmatprep.subr.mxu0 0.0
        %1043 = vmatpush1.xpose.msra.mxu0 0.0
        %1044 = vmatprep.subr.mxu0 0.0
        %1045 = vmatpush1.xpose.msra.mxu0 0.0
        %1046 = vmatprep.subr.mxu0 0.0
        %1047 = vmatpush1.xpose.msra.mxu0 0.0
        %1048 = vmatprep.subr.mxu0 0.0
        %1049 = vmatpush1.xpose.msra.mxu0 0.0
        %1050 = vmatprep.subr.mxu0 0.0
        %1051 = vmatpush1.xpose.msra.mxu0 0.0
        %1052 = vmatprep.subr.mxu0 0.0
        %1053 = vmatpush1.xpose.msra.mxu0 0.0
        %1054 = vmatprep.subr.mxu0 0.0
        %1055 = vmatpush1.xpose.msra.mxu0 0.0
        %1056 = vmatprep.subr.mxu0 0.0
        %1057 = vmatpush1.xpose.msra.mxu0 0.0
        %1058 = vmatprep.subr.mxu0 0.0
        %1059 = vmatpush1.xpose.msra.mxu0 0.0
        %1060 = vmatprep.subr.mxu0 0.0
        %1061 = vmatpush1.xpose.msra.mxu0 0.0
        %1062 = vmatprep.subr.mxu0 0.0
        %1063 = vmatpush1.xpose.msra.mxu0 0.0
        %1064 = vmatprep.subr.mxu0 0.0
        %1065 = vmatpush1.xpose.msra.mxu0 0.0
        %1066 = vmatprep.subr.mxu0 0.0
        %1067 = vmatpush1.xpose.msra.mxu0 0.0
        %1068 = vmatprep.subr.mxu0 0.0
        %1069 = vmatpush1.xpose.msra.mxu0 0.0
        %1070 = vmatprep.subr.mxu0 0.0
        %1071 = vmatpush1.xpose.msra.mxu0 0.0
        %1072 = vmatprep.subr.mxu0 0.0
        %1073 = vmatpush1.xpose.msra.mxu0 0.0
        %1074 = vmatprep.subr.mxu0 0.0
        %1075 = vmatpush1.xpose.msra.mxu0 0.0
        %1076 = vmatprep.subr.mxu0 0.0
        %1077 = vmatpush1.xpose.msra.mxu0 0.0
        %1078 = vmatprep.subr.mxu0 0.0
        %1079 = vmatpush1.xpose.msra.mxu0 0.0
        %1080 = vmatprep.subr.mxu0 0.0
        %1081 = vmatpush1.xpose.msra.mxu0 0.0
        %1082 = vmatprep.subr.mxu0 0.0
        %1083 = vmatpush1.xpose.msra.mxu0 0.0
        %1084 = vmatprep.subr.mxu0 0.0
        %1085 = vmatpush1.xpose.msra.mxu0 0.0
        %1086 = vmatprep.subr.mxu0 0.0
        %1087 = vmatpush1.xpose.msra.mxu0 0.0
        %1088 = vmatprep.subr.mxu0 0.0
        %1089 = vmatpush1.xpose.msra.mxu0 0.0
        %1090 = vmatprep.subr.mxu0 0.0
        %1091 = vmatpush1.xpose.msra.mxu0 0.0
        %1092 = vmatprep.subr.mxu0 0.0
        %1093 = vmatpush1.xpose.msra.mxu0 0.0
        %1094 = vmatprep.mubr.f32.mxu0 0.0
        %1095 = vmatmul.mubr.f32.gmra.mrb[0].mxu0 %v1026
        %v1096 = vpop.f32.mrb[0].mxu0
        %v1097 = vadd.f32 0.0, %v1096
        %v1098 = vpop.f32.mrb[0].mxu0
        %1099 = vdwg.mxu0
        %v1100 = vsel %vm692, %v1097, -inf
        %1101 = vmax.xlane.f32.xlu0 %v1100
        %v1102 = vpop.xlane.xlu0 %1101
        %v1103 = vsub.f32 %v1097, %v1102
        %v1104 = vmul.f32 %v1103, 1.442695
        %v1105 = vpow.pop %v1104
        %v1106 = vsel %vm692, %v1105, 0.0
        %1107 = vadd.xlane.f32.xlu0 %v1106
        %v1108 = vpop.xlane.xlu0 %1107
        %v1109 = vrcp.pop %v1108
        %v1110 = vmul.f32 %v1105, %v1109
        %s1111 = scalar_lea.vmem %s419, 16 [#allocation14]
        %1112 = vst.msk [vmem:[%s1111] sm:$0xff] %vm692, %v1110
        %1113 = vrot.lane.b32.xlu0 %v688, 112
        %v1114 = vpop.permute.xlu0 %1113
        %v1117 = vsel %vm692, %v1110, 0
        %1119 = vmatprep.subr.mxu0 0.0
        %1120 = vmatpush1.msra.mxu0 %v1114
        %1121 = vmatprep.subr.mxu0 0.0
        %1122 = vmatpush1.msra.mxu0 0.0
        %1123 = vmatprep.subr.mxu0 0.0
        %1124 = vmatpush1.msra.mxu0 0.0
        %1125 = vmatprep.subr.mxu0 0.0
        %1126 = vmatpush1.msra.mxu0 0.0
        %1127 = vmatprep.subr.mxu0 0.0
        %1128 = vmatpush1.msra.mxu0 0.0
        %1129 = vmatprep.subr.mxu0 0.0
        %1130 = vmatpush1.msra.mxu0 0.0
        %1131 = vmatprep.subr.mxu0 0.0
        %1132 = vmatpush1.msra.mxu0 0.0
        %1133 = vmatprep.subr.mxu0 0.0
        %1134 = vmatpush1.msra.mxu0 0.0
        %1135 = vmatprep.subr.mxu0 0.0
        %1136 = vmatpush1.msra.mxu0 0.0
        %1137 = vmatprep.subr.mxu0 0.0
        %1138 = vmatpush1.msra.mxu0 0.0
        %1139 = vmatprep.subr.mxu0 0.0
        %1140 = vmatpush1.msra.mxu0 0.0
        %1141 = vmatprep.subr.mxu0 0.0
        %1142 = vmatpush1.msra.mxu0 0.0
        %1143 = vmatprep.subr.mxu0 0.0
        %1144 = vmatpush1.msra.mxu0 0.0
        %1145 = vmatprep.subr.mxu0 0.0
        %1146 = vmatpush1.msra.mxu0 0.0
        %1147 = vmatprep.subr.mxu0 0.0
        %1148 = vmatpush1.msra.mxu0 0.0
        %1149 = vmatprep.subr.mxu0 0.0
        %1150 = vmatpush1.msra.mxu0 0.0
        %1151 = vmatprep.subr.mxu0 0.0
        %1152 = vmatpush1.msra.mxu0 0.0
        %1153 = vmatprep.subr.mxu0 0.0
        %1154 = vmatpush1.msra.mxu0 0.0
        %1155 = vmatprep.subr.mxu0 0.0
        %1156 = vmatpush1.msra.mxu0 0.0
        %1157 = vmatprep.subr.mxu0 0.0
        %1158 = vmatpush1.msra.mxu0 0.0
        %1159 = vmatprep.subr.mxu0 0.0
        %1160 = vmatpush1.msra.mxu0 0.0
        %1161 = vmatprep.subr.mxu0 0.0
        %1162 = vmatpush1.msra.mxu0 0.0
        %1163 = vmatprep.subr.mxu0 0.0
        %1164 = vmatpush1.msra.mxu0 0.0
        %1165 = vmatprep.subr.mxu0 0.0
        %1166 = vmatpush1.msra.mxu0 0.0
        %1167 = vmatprep.subr.mxu0 0.0
        %1168 = vmatpush1.msra.mxu0 0.0
        %1169 = vmatprep.subr.mxu0 0.0
        %1170 = vmatpush1.msra.mxu0 0.0
        %1171 = vmatprep.subr.mxu0 0.0
        %1172 = vmatpush1.msra.mxu0 0.0
        %1173 = vmatprep.subr.mxu0 0.0
        %1174 = vmatpush1.msra.mxu0 0.0
        %1175 = vmatprep.subr.mxu0 0.0
        %1176 = vmatpush1.msra.mxu0 0.0
        %1177 = vmatprep.subr.mxu0 0.0
        %1178 = vmatpush1.msra.mxu0 0.0
        %1179 = vmatprep.subr.mxu0 0.0
        %1180 = vmatpush1.msra.mxu0 0.0
        %1181 = vmatprep.subr.mxu0 0.0
        %1182 = vmatpush1.msra.mxu0 0.0
        %1183 = vmatprep.mubr.f32.mxu0 0.0
        %1184 = vmatmul.mubr.f32.gmra.mrb[0].mxu0 %v1117
        %v1185 = vpop.f32.mrb[0].mxu0
        %v1186 = vadd.f32 0.0, %v1185
        %v1187 = vpop.f32.mrb[0].mxu0
        %1188 = vdwg.mxu0
        %1189 = vrot.lane.b32.xlu0 %v691, 104
        %v1190 = vpop.permute.xlu0 %1189
        %1191 = vrot.lane.b32.xlu0 %v599, 104
        %v1192 = vpop.permute.xlu0 %1191
        %v1193 = vsel %vm692, %v1190, 0
        %v1195 = vsel %vm692, %v1192, 0
        %1197 = vmatprep.subr.mxu0 0.0
        %1198 = vmatpush1.xpose.msra.mxu0 %v1195
        %1199 = vmatprep.subr.mxu0 0.0
        %1200 = vmatpush1.xpose.msra.mxu0 0.0
        %1201 = vmatprep.subr.mxu0 0.0
        %1202 = vmatpush1.xpose.msra.mxu0 0.0
        %1203 = vmatprep.subr.mxu0 0.0
        %1204 = vmatpush1.xpose.msra.mxu0 0.0
        %1205 = vmatprep.subr.mxu0 0.0
        %1206 = vmatpush1.xpose.msra.mxu0 0.0
        %1207 = vmatprep.subr.mxu0 0.0
        %1208 = vmatpush1.xpose.msra.mxu0 0.0
        %1209 = vmatprep.subr.mxu0 0.0
        %1210 = vmatpush1.xpose.msra.mxu0 0.0
        %1211 = vmatprep.subr.mxu0 0.0
        %1212 = vmatpush1.xpose.msra.mxu0 0.0
        %1213 = vmatprep.subr.mxu0 0.0
        %1214 = vmatpush1.xpose.msra.mxu0 0.0
        %1215 = vmatprep.subr.mxu0 0.0
        %1216 = vmatpush1.xpose.msra.mxu0 0.0
        %1217 = vmatprep.subr.mxu0 0.0
        %1218 = vmatpush1.xpose.msra.mxu0 0.0
        %1219 = vmatprep.subr.mxu0 0.0
        %1220 = vmatpush1.xpose.msra.mxu0 0.0
        %1221 = vmatprep.subr.mxu0 0.0
        %1222 = vmatpush1.xpose.msra.mxu0 0.0
        %1223 = vmatprep.subr.mxu0 0.0
        %1224 = vmatpush1.xpose.msra.mxu0 0.0
        %1225 = vmatprep.subr.mxu0 0.0
        %1226 = vmatpush1.xpose.msra.mxu0 0.0
        %1227 = vmatprep.subr.mxu0 0.0
        %1228 = vmatpush1.xpose.msra.mxu0 0.0
        %1229 = vmatprep.subr.mxu0 0.0
        %1230 = vmatpush1.xpose.msra.mxu0 0.0
        %1231 = vmatprep.subr.mxu0 0.0
        %1232 = vmatpush1.xpose.msra.mxu0 0.0
        %1233 = vmatprep.subr.mxu0 0.0
        %1234 = vmatpush1.xpose.msra.mxu0 0.0
        %1235 = vmatprep.subr.mxu0 0.0
        %1236 = vmatpush1.xpose.msra.mxu0 0.0
        %1237 = vmatprep.subr.mxu0 0.0
        %1238 = vmatpush1.xpose.msra.mxu0 0.0
        %1239 = vmatprep.subr.mxu0 0.0
        %1240 = vmatpush1.xpose.msra.mxu0 0.0
        %1241 = vmatprep.subr.mxu0 0.0
        %1242 = vmatpush1.xpose.msra.mxu0 0.0
        %1243 = vmatprep.subr.mxu0 0.0
        %1244 = vmatpush1.xpose.msra.mxu0 0.0
        %1245 = vmatprep.subr.mxu0 0.0
        %1246 = vmatpush1.xpose.msra.mxu0 0.0
        %1247 = vmatprep.subr.mxu0 0.0
        %1248 = vmatpush1.xpose.msra.mxu0 0.0
        %1249 = vmatprep.subr.mxu0 0.0
        %1250 = vmatpush1.xpose.msra.mxu0 0.0
        %1251 = vmatprep.subr.mxu0 0.0
        %1252 = vmatpush1.xpose.msra.mxu0 0.0
        %1253 = vmatprep.subr.mxu0 0.0
        %1254 = vmatpush1.xpose.msra.mxu0 0.0
        %1255 = vmatprep.subr.mxu0 0.0
        %1256 = vmatpush1.xpose.msra.mxu0 0.0
        %1257 = vmatprep.subr.mxu0 0.0
        %1258 = vmatpush1.xpose.msra.mxu0 0.0
        %1259 = vmatprep.subr.mxu0 0.0
        %1260 = vmatpush1.xpose.msra.mxu0 0.0
        %1261 = vmatprep.mubr.f32.mxu0 0.0
        %1262 = vmatmul.mubr.f32.gmra.mrb[0].mxu0 %v1193
        %v1263 = vpop.f32.mrb[0].mxu0
        %v1264 = vadd.f32 0.0, %v1263
        %v1265 = vpop.f32.mrb[0].mxu0
        %1266 = vdwg.mxu0
        %v1267 = vsel %vm692, %v1264, -inf
        %1268 = vmax.xlane.f32.xlu0 %v1267
        %v1269 = vpop.xlane.xlu0 %1268
        %v1270 = vsub.f32 %v1264, %v1269
        %v1271 = vmul.f32 %v1270, 1.442695
        %v1272 = vpow.pop %v1271
        %v1273 = vsel %vm692, %v1272, 0.0
        %1274 = vadd.xlane.f32.xlu0 %v1273
        %v1275 = vpop.xlane.xlu0 %1274
        %v1276 = vrcp.pop %v1275
        %v1277 = vmul.f32 %v1272, %v1276
        %s1278 = scalar_lea.vmem %s419, 24 [#allocation14]
        %1279 = vst.msk [vmem:[%s1278] sm:$0xff] %vm692, %v1277
        %1280 = vrot.lane.b32.xlu0 %v688, 104
        %v1281 = vpop.permute.xlu0 %1280
        %v1284 = vsel %vm692, %v1277, 0
        %1286 = vmatprep.subr.mxu0 0.0
        %1287 = vmatpush1.msra.mxu0 %v1281
        %1288 = vmatprep.subr.mxu0 0.0
        %1289 = vmatpush1.msra.mxu0 0.0
        %1290 = vmatprep.subr.mxu0 0.0
        %1291 = vmatpush1.msra.mxu0 0.0
        %1292 = vmatprep.subr.mxu0 0.0
        %1293 = vmatpush1.msra.mxu0 0.0
        %1294 = vmatprep.subr.mxu0 0.0
        %1295 = vmatpush1.msra.mxu0 0.0
        %1296 = vmatprep.subr.mxu0 0.0
        %1297 = vmatpush1.msra.mxu0 0.0
        %1298 = vmatprep.subr.mxu0 0.0
        %1299 = vmatpush1.msra.mxu0 0.0
        %1300 = vmatprep.subr.mxu0 0.0
        %1301 = vmatpush1.msra.mxu0 0.0
        %1302 = vmatprep.subr.mxu0 0.0
        %1303 = vmatpush1.msra.mxu0 0.0
        %1304 = vmatprep.subr.mxu0 0.0
        %1305 = vmatpush1.msra.mxu0 0.0
        %1306 = vmatprep.subr.mxu0 0.0
        %1307 = vmatpush1.msra.mxu0 0.0
        %1308 = vmatprep.subr.mxu0 0.0
        %1309 = vmatpush1.msra.mxu0 0.0
        %1310 = vmatprep.subr.mxu0 0.0
        %1311 = vmatpush1.msra.mxu0 0.0
        %1312 = vmatprep.subr.mxu0 0.0
        %1313 = vmatpush1.msra.mxu0 0.0
        %1314 = vmatprep.subr.mxu0 0.0
        %1315 = vmatpush1.msra.mxu0 0.0
        %1316 = vmatprep.subr.mxu0 0.0
        %1317 = vmatpush1.msra.mxu0 0.0
        %1318 = vmatprep.subr.mxu0 0.0
        %1319 = vmatpush1.msra.mxu0 0.0
        %1320 = vmatprep.subr.mxu0 0.0
        %1321 = vmatpush1.msra.mxu0 0.0
        %1322 = vmatprep.subr.mxu0 0.0
        %1323 = vmatpush1.msra.mxu0 0.0
        %1324 = vmatprep.subr.mxu0 0.0
        %1325 = vmatpush1.msra.mxu0 0.0
        %1326 = vmatprep.subr.mxu0 0.0
        %1327 = vmatpush1.msra.mxu0 0.0
        %1328 = vmatprep.subr.mxu0 0.0
        %1329 = vmatpush1.msra.mxu0 0.0
        %1330 = vmatprep.subr.mxu0 0.0
        %1331 = vmatpush1.msra.mxu0 0.0
        %1332 = vmatprep.subr.mxu0 0.0
        %1333 = vmatpush1.msra.mxu0 0.0
        %1334 = vmatprep.subr.mxu0 0.0
        %1335 = vmatpush1.msra.mxu0 0.0
        %1336 = vmatprep.subr.mxu0 0.0
        %1337 = vmatpush1.msra.mxu0 0.0
        %1338 = vmatprep.subr.mxu0 0.0
        %1339 = vmatpush1.msra.mxu0 0.0
        %1340 = vmatprep.subr.mxu0 0.0
        %1341 = vmatpush1.msra.mxu0 0.0
        %1342 = vmatprep.subr.mxu0 0.0
        %1343 = vmatpush1.msra.mxu0 0.0
        %1344 = vmatprep.subr.mxu0 0.0
        %1345 = vmatpush1.msra.mxu0 0.0
        %1346 = vmatprep.subr.mxu0 0.0
        %1347 = vmatpush1.msra.mxu0 0.0
        %1348 = vmatprep.subr.mxu0 0.0
        %1349 = vmatpush1.msra.mxu0 0.0
        %1350 = vmatprep.mubr.f32.mxu0 0.0
        %1351 = vmatmul.mubr.f32.gmra.mrb[0].mxu0 %v1284
        %v1352 = vpop.f32.mrb[0].mxu0
        %v1353 = vadd.f32 0.0, %v1352
        %v1354 = vpop.f32.mrb[0].mxu0
        %1355 = vdwg.mxu0
        %1357 = vrot.lane.b32.xlu0 %v1019, 8
        %v1358 = vpop.permute.xlu0 %1357
        %1361 = vrot.lane.b32.xlu0 %v1186, 16
        %v1362 = vpop.permute.xlu0 %1361
        %1365 = vrot.lane.b32.xlu0 %v1353, 24
        %v1366 = vpop.permute.xlu0 %1365
        %v1368 = vsel %vm692, %v851, %v1358
        %vm1369 = vcmask 130048
        %v1370 = vsel %vm1369, %v1368, %v1362
        %vm1371 = vcmask 195584
        %v1372 = vsel %vm1371, %v1370, %v1366
        %1373 = vst.msk [vmem:[%s412] sm:$0xff] %vm427, %v1372
        %s1374 = sand.u32 %s182, 1
        %s1375 = scalar_lea.sflag [#allocation4], %s1374
        %s1376 = sand.u32 %s182, 1
        %s1377 = smul.addr %s1376, 8
        %s1378 = scalar_lea.vmem [#allocation13], %s1377
        %s1379 = sand.u32 %s208, 1
        %s1380 = scalar_lea.sflag [#allocation15], %s1379
        %s1381 = sand.u32 %s208, 1
        %s1382 = smul.addr %s1381, 32
        %s1383 = scalar_lea.vmem [#allocation14], %s1382
        // Predicated region
        $region69: #{tpu_custom_call.1} parent=43 // pred_check
          %p1384 = pneg %p192
        $region70: #{tpu_custom_call.1} parent=43 // pred_check_branch
          %1386 = sbr.rel (%p1384) target = $region72
        $region71: #{tpu_custom_call.1} parent=43 // pred_region
          %s1388 = ssub.s32 128, 128
          %1389 = vsyncadd %s1375, %s1388
          %s1390 = smul.addr %s33, 128
          %s1391 = scalar_lea.hbm %s6, %s1390
          %s1393 = sshll.u32 %s1378, 4
          %s1394 = int_to_ptr.vmem [resolvable:$true] %s1393
          %1396 = dma.vmem_to_hbm [thread:$0]  %s1394, 128, %s1391, %s1375
        $region72: #{tpu_custom_call.1} parent=43 // pred_fallthru
          _
        // Predicated region
        $region73: #{tpu_custom_call.1} parent=43 // pred_check
          %p1397 = pneg %p218
        $region74: #{tpu_custom_call.1} parent=43 // pred_check_branch
          %1399 = sbr.rel (%p1397) target = $region76
        $region75: #{tpu_custom_call.1} parent=43 // pred_region
          %s1401 = ssub.s32 512, 512
          %1402 = vsyncadd %s1380, %s1401
          %s1403 = smul.addr %s33, 4
          %s1404 = smul.addr %s1403, 128
          %s1405 = scalar_lea.hbm %s7, %s1404
          %s1406 = sshll.u32 %s1383, 4
          %s1407 = int_to_ptr.vmem [resolvable:$true] %s1406
          %1412 = dma.vmem_to_hbm [thread:$0]  %s1407, 512, %s1405, %s1380, 128, 128, 8
        $region76: #{tpu_custom_call.1} parent=43 // pred_fallthru
          _
      $region44: #{tpu_custom_call.1} parent=5 // pred_fallthru
        _
      %p1413 = scmp.le.s32.totalorder 2, %s28
      // Predicated region
      $region77: #{tpu_custom_call.1} parent=5 // pred_check
        %p1414 = pneg %p1413
      $region78: #{tpu_custom_call.1} parent=5 // pred_check_branch
        %1416 = sbr.rel (%p1414) target = $region80
      $region79: #{tpu_custom_call.1} parent=5 // pred_region
        %s1417 = ssub.s32 %s28, 2
        // Predicated region
        $region81: #{tpu_custom_call.1} parent=79 // pred_check
          %p1418 = pneg %p198
        $region82: #{tpu_custom_call.1} parent=79 // pred_check_branch
          %1420 = sbr.rel (%p1418) target = $region84
        $region83: #{tpu_custom_call.1} parent=79 // pred_region
          %s1421 = sand.u32 %s183, 1
          %s1422 = scalar_lea.sflag [#allocation4], %s1421
          %s1423 = sand.u32 %s183, 1
          %s1424 = smul.addr %s1423, 8
          %s1425 = scalar_lea.vmem [#allocation13], %s1424
          %1426 = dma.done %s1422, 128
        $region84: #{tpu_custom_call.1} parent=79 // pred_fallthru
          _
        // Predicated region
        $region85: #{tpu_custom_call.1} parent=79 // pred_check
          %p1427 = pneg %p224
        $region86: #{tpu_custom_call.1} parent=79 // pred_check_branch
          %1429 = sbr.rel (%p1427) target = $region88
        $region87: #{tpu_custom_call.1} parent=79 // pred_region
          %s1430 = sand.u32 %s209, 1
          %s1431 = scalar_lea.sflag [#allocation15], %s1430
          %s1432 = sand.u32 %s209, 1
          %s1433 = smul.addr %s1432, 32
          %s1434 = scalar_lea.vmem [#allocation14], %s1433
          %1435 = dma.done %s1431, 512
        $region88: #{tpu_custom_call.1} parent=79 // pred_fallthru
          _
      $region80: #{tpu_custom_call.1} parent=5 // pred_fallthru
        _
    $region6: #{tpu_custom_call.1} parent=1 // loop_footer
      %s32 = sadd.s32 1, %s28
    $region7: #{tpu_custom_call.1} parent=1 // loop_footer_branch
      %27 = sbr.rel target = $region3
    $region8: #{tpu_custom_call.1} parent=1 // loop_exit
      _
    %1436 = vsyncpa [#allocation3], 1
    %s1437 = scalar_lea.sflag [#allocation3], 1
    %1438 = vsyncpa %s1437, 1
    %1439 = vsyncpa [#allocation6], 1
    %s1440 = scalar_lea.sflag [#allocation6], 1
    %1441 = vsyncpa %s1440, 1
    %1442 = vsyncpa [#allocation9], 1
    %1443 = vsyncpa [#allocation12], 1
    %1444 = vsyncpa [#allocation4], 1
    %s1445 = scalar_lea.sflag [#allocation4], 1
    %1446 = vsyncpa %s1445, 1
    %1447 = vsyncpa [#allocation15], 1
    %s1448 = scalar_lea.sflag [#allocation15], 1
    %1449 = vsyncpa %s1448, 1

</llo_original>
